<compile_context>
chip_gen: v5e
topology: v5e:2x2
jax: 0.10.0
libtpu: 0.0.40
codegen_flags: <defaults>
</compile_context>

<pallas_src>
import jax
import jax.numpy as jnp
from jax.experimental import pallas as pl
from jax.experimental.pallas import tpu as pltpu


def _round_up(x, m):
    return ((x + m - 1) // m) * m


def _largest_divisor_leq(n, cap):
    d = max(1, min(cap, n))
    while n % d:
        d -= 1
    return d


def _pick_tiles(B_pad, T, D_pad, batch_tile, time_chunk, mxu_itemsize):
    # Batch tile: multiple of 16 (bf16 sublane pack) dividing B_pad, <= batch_tile.
    Tb = max(16, min(batch_tile, B_pad))
    Tb -= Tb % 16
    while B_pad % Tb:
        Tb -= 16
    # v7x megacore: prefer >= 2 batch tiles on the "parallel" axis; halve Tb rather
    # than leaving a single tile (only if the halved tile stays 16-aligned).
    if B_pad // Tb < 2 and Tb % 32 == 0:
        Tb //= 2

    Tt = _largest_divisor_leq(T, time_chunk)

    def vmem_est(tt, tb):
        txt_b = 2 * tt * tb * D_pad * mxu_itemsize        # txt chunk (double buffered)
        w_b = 2 * 2 * D_pad * D_pad * mxu_itemsize        # Wi + Wh (worst case 2 bufs)
        bias_b = 2 * 2 * D_pad * 4                        # b_ih + b_hh
        out_b = 2 * tb * D_pad * 4                        # output tile
        scr_b = (tt * tb * D_pad + 2 * tb * D_pad) * 4    # i2h slab + h + acc scratch
        return txt_b + w_b + bias_b + out_b + scr_b

    budget = 28 << 20  # conservative; leaves headroom even on v7x (64 MiB physical)
    while vmem_est(Tt, Tb) > budget and Tt > 1:
        Tt = _largest_divisor_leq(T, Tt - 1)
    while vmem_est(Tt, Tb) > budget and Tb > 16 and Tb % 32 == 0:
        Tb //= 2

    est = vmem_est(Tt, Tb)
    vmem_limit = int(min(max(int(est * 1.3) + (4 << 20), 16 << 20), 60 << 20))
    return Tt, Tb, vmem_limit


def _make_fixed_rnn_kernel(inv_num_steps, mxu_dtype):
    def kernel(txt_ref, wi_ref, wh_ref, bi_ref, bh_ref, out_ref,
               i2h_ref, h_ref, acc_ref):
        # txt_ref: [Tt, Tb, D] time-major chunk (mxu_dtype)
        # wi_ref/wh_ref: [D, D] ([in, out], mxu_dtype); bi_ref/bh_ref: [1, D] f32
        # scratch: i2h_ref [Tt, Tb, D] f32, h_ref/acc_ref [Tb, D] f32
        t = pl.program_id(1)
        nt = pl.num_programs(1)
        Tt, Tb, D = txt_ref.shape

        # ---- Hoisted input->hidden: one big MXU matmul for the whole chunk with
        #      b_ih folded in.  (Tt, Tb, D) -> (Tt*Tb, D) is layout-trivial (Tb is a
        #      multiple of 16, D a multiple of 128).  Result goes straight to a VMEM
        #      scratch slab so it never lives in vregs across the serial loop.
        x = txt_ref[...].reshape(Tt * Tb, D)
        slab = jnp.dot(x, wi_ref[...],
                       preferred_element_type=jnp.float32) + bi_ref[...]
        i2h_ref[...] = slab.reshape(Tt, Tb, D)

        # ---- Chunk-entry state (the recurrence is carried across time chunks).
        @pl.when(t == 0)
        def _():
            h_ref[...] = jnp.zeros_like(h_ref)
            acc_ref[...] = jnp.zeros_like(acc_ref)

        wh = wh_ref[...]
        bh = bh_ref[...]
        # b_hh contribution for the very first global step is exactly zero
        # (h == 0 there, so the h2h matmul also contributes exactly zero).
        bh_first = (t > 0).astype(jnp.float32) * bh   # [1, D]: 0 at t==0, bh otherwise

        # ---- Serial recurrence over the chunk (fully unrolled at trace time).
        #      One small h2h matmul + relu per step; acc accumulates into VMEM
        #      scratch (planned store, not compiler spill) and only h is carried.
        h = h_ref[...]
        for i in range(Tt):
            bh_i = bh_first if i == 0 else bh
            pre = (i2h_ref[i]
                   + jnp.dot(h.astype(mxu_dtype), wh,
                             preferred_element_type=jnp.float32)
                   + bh_i)
            h = jnp.maximum(pre, 0.0)
            acc_ref[...] = acc_ref[...] + h

        h_ref[...] = h   # carry to the next time chunk

        @pl.when(t == nt - 1)
        def _():
            out_ref[...] = (acc_ref[...] * inv_num_steps).astype(out_ref.dtype)

    return kernel


def _build_pallas_call(kernel, B_pad, D_pad, Tt, Tb, grid, vmem_limit,
                       single_buffer_weights):
    # Constant-index blocks (weights / biases) never change across the grid; a
    # single buffer avoids wasting VMEM on a useless second copy (matters for big D).
    const_kwargs = dict(pipeline_mode=pl.Buffered(1)) if single_buffer_weights else {}
    in_specs = [
        pl.BlockSpec((Tt, Tb, D_pad), lambda b, t: (t, b, 0)),                # txt chunk
        pl.BlockSpec((D_pad, D_pad), lambda b, t: (0, 0), **const_kwargs),    # Wi^T
        pl.BlockSpec((D_pad, D_pad), lambda b, t: (0, 0), **const_kwargs),    # Wh^T
        pl.BlockSpec((1, D_pad), lambda b, t: (0, 0), **const_kwargs),        # b_ih
        pl.BlockSpec((1, D_pad), lambda b, t: (0, 0), **const_kwargs),        # b_hh
    ]
    return pl.pallas_call(
        kernel,
        out_shape=jax.ShapeDtypeStruct((B_pad, D_pad), jnp.float32),
        grid_spec=pltpu.PrefetchScalarGridSpec(
            num_scalar_prefetch=0,
            grid=grid,
            in_specs=in_specs,
            out_specs=pl.BlockSpec((Tb, D_pad), lambda b, t: (b, 0)),
            scratch_shapes=[
                pltpu.VMEM((Tt, Tb, D_pad), jnp.float32),  # hoisted i2h slab
                pltpu.VMEM((Tb, D_pad), jnp.float32),      # hidden state (chunk carry)
                pltpu.VMEM((Tb, D_pad), jnp.float32),      # running sum (chunk carry)
            ],
        ),
        compiler_params=pltpu.CompilerParams(
            dimension_semantics=("parallel", "arbitrary"),
            vmem_limit_bytes=vmem_limit,
        ),
    )


def fixed_rnn_pallas(txt, wi, bi, wh, bh, *, num_steps=None,
                     mxu_dtype=jnp.bfloat16, time_chunk=32, batch_tile=256,
                     time_major=False, single_buffer_weights=True):
    """fixed_rnn forward.

    txt: [B, T, D] (or [T, B, D] if time_major=True); wi/wh: PyTorch-style
    [out, in]; bi/bh: [D].  Returns [B, D] float32.
    """
    assert txt.ndim == 3
    if time_major:
        if num_steps is not None:
            txt = txt[:num_steps]
        T, B, D = txt.shape
    else:
        if num_steps is not None:
            txt = txt[:, :num_steps]
        B, T, D = txt.shape

    B_pad = _round_up(B, 16)
    D_pad = _round_up(D, 128)
    itemsize = jnp.dtype(mxu_dtype).itemsize
    Tt, Tb, vmem_limit = _pick_tiles(B_pad, T, D_pad, batch_tile, time_chunk, itemsize)

    # Single fused pre-pass: cast to the MXU streaming dtype + pad to dense tiles
    # (+ time-major transpose only when the caller could not provide it upstream).
    if time_major:
        txt_tm = jnp.pad(txt.astype(mxu_dtype),
                         ((0, 0), (0, B_pad - B), (0, D_pad - D)))
    else:
        txt_p = jnp.pad(txt.astype(mxu_dtype),
                        ((0, B_pad - B), (0, 0), (0, D_pad - D)))
        txt_tm = jnp.transpose(txt_p, (1, 0, 2))            # [T, B_pad, D_pad]

    pad2 = ((0, D_pad - D), (0, D_pad - D))
    wi_t = jnp.pad(jnp.transpose(wi).astype(mxu_dtype), pad2)   # [in, out]
    wh_t = jnp.pad(jnp.transpose(wh).astype(mxu_dtype), pad2)
    bi2 = jnp.pad(bi.astype(jnp.float32), (0, D_pad - D)).reshape(1, D_pad)
    bh2 = jnp.pad(bh.astype(jnp.float32), (0, D_pad - D)).reshape(1, D_pad)

    grid = (B_pad // Tb, T // Tt)   # (parallel batch tiles, serial time chunks)
    kernel = _make_fixed_rnn_kernel(1.0 / T, mxu_dtype)
    args = (txt_tm, wi_t, wh_t, bi2, bh2)

    try:
        out_pad = _build_pallas_call(kernel, B_pad, D_pad, Tt, Tb, grid, vmem_limit,
                                     single_buffer_weights)(*args)
    except Exception:
        if not single_buffer_weights:
            raise
        # Fallback: default (double) buffering for the constant blocks.
        out_pad = _build_pallas_call(kernel, B_pad, D_pad, Tt, Tb, grid, vmem_limit,
                                     False)(*args)

    return out_pad[:B, :D]


# ----------------------------- references ----------------------------------------

def fixed_rnn_ref(txt, wi, bi, wh, bh):
    """Pure-JAX f32 reference mirroring the PyTorch forward."""
    B, T, D = txt.shape
    res = []
    for i in range(T):
        i2h = txt[:, i] @ wi.T + bi
        if i == 0:
            h = jnp.maximum(i2h, 0.0)
        else:
            h2h = res[i - 1] @ wh.T + bh
            h = jnp.maximum(i2h + h2h, 0.0)
        res.append(h)
    return jnp.mean(jnp.stack(res, axis=1), axis=1)


def fixed_rnn_ref_mxu(txt, wi, bi, wh, bh, dtype):
    """Reference that mimics the kernel's mixed precision (dtype matmul inputs,
    f32 accumulation/state) for tight validation of the bf16 path."""
    B, T, D = txt.shape
    wi_t = jnp.transpose(wi).astype(dtype)
    wh_t = jnp.transpose(wh).astype(dtype)
    x = txt.astype(dtype)
    acc = jnp.zeros((B, D), jnp.float32)
    h = None
    for i in range(T):
        i2h = jnp.dot(x[:, i], wi_t, preferred_element_type=jnp.float32) + bi
        if i == 0:
            h = jnp.maximum(i2h, 0.0)
        else:
            pre = i2h + jnp.dot(h.astype(dtype), wh_t,
                                preferred_element_type=jnp.float32) + bh
            h = jnp.maximum(pre, 0.0)
        acc = acc + h
    return acc * (1.0 / T)


if __name__ == "__main__":
    key = jax.random.PRNGKey(0)

    def make_inputs(B, T, D, salt):
        ks = jax.random.split(jax.random.fold_in(key, salt), 5)
        txt = jax.random.normal(ks[0], (B, T, D), dtype=jnp.float32)
        wi = jax.random.normal(ks[1], (D, D), dtype=jnp.float32) * 0.1
        bi = jax.random.normal(ks[2], (D,), dtype=jnp.float32) * 0.1
        wh = jax.random.normal(ks[3], (D, D), dtype=jnp.float32) * 0.1
        bh = jax.random.normal(ks[4], (D,), dtype=jnp.float32) * 0.1
        return txt, wi, bi, wh, bh

    # 1) bf16 MXU path (default production config): single time chunk / batch tile.
    txt, wi, bi, wh, bh = make_inputs(2, 8, 32, 1)
    out = jax.block_until_ready(fixed_rnn_pallas(txt, wi, bi, wh, bh))
    assert out.shape == (2, 32)
    ref_mxu = fixed_rnn_ref_mxu(txt, wi, bi, wh, bh, jnp.bfloat16)
    ref_f32 = fixed_rnn_ref(txt, wi, bi, wh, bh)
    assert jnp.allclose(out, ref_mxu, atol=5e-3, rtol=5e-3), "bf16 path vs mixed-precision ref"
    assert jnp.allclose(out, ref_f32, atol=5e-2, rtol=5e-2), "bf16 path vs f32 ref (loose)"

    # 2) f32 MXU path, two time chunks -> exercises the cross-chunk recurrence carry
    #    and exact parity (incl. step-0 b_hh handling) with the reference.
    txt, wi, bi, wh, bh = make_inputs(2, 8, 32, 2)
    out = jax.block_until_ready(
        fixed_rnn_pallas(txt, wi, bi, wh, bh, mxu_dtype=jnp.float32, time_chunk=4))
    assert jnp.allclose(out, fixed_rnn_ref(txt, wi, bi, wh, bh), atol=1e-5, rtol=1e-5)

    # 3) Odd shapes (batch/emb padding), two time chunks, f32 exact parity.
    txt, wi, bi, wh, bh = make_inputs(3, 12, 48, 3)
    out = jax.block_until_ready(
        fixed_rnn_pallas(txt, wi, bi, wh, bh, mxu_dtype=jnp.float32, time_chunk=6))
    assert jnp.allclose(out, fixed_rnn_ref(txt, wi, bi, wh, bh), atol=1e-5, rtol=1e-5)

    # 4) bf16, >= 2 batch tiles (v7x megacore split) and the upstream time-major path
    #    (no transpose pre-pass).
    txt, wi, bi, wh, bh = make_inputs(64, 8, 32, 4)
    txt_tm = jnp.transpose(txt, (1, 0, 2))
    out = jax.block_until_ready(fixed_rnn_pallas(txt_tm, wi, bi, wh, bh, time_major=True))
    assert out.shape == (64, 32)
    ref_mxu = fixed_rnn_ref_mxu(txt, wi, bi, wh, bh, jnp.bfloat16)
    assert jnp.allclose(out, ref_mxu, atol=5e-3, rtol=5e-3), "multi-tile bf16 path"

    print("KERNEL_OK")
</pallas_src>

<mosaic_0001>
module attributes {stable_mosaic.version = 11 : i64} {
  func.func @kernel(%arg0: i32, %arg1: i32, %arg2: memref<8x16x128xbf16, #tpu.memory_space<vmem>>, %arg3: memref<128x128xbf16, #tpu.memory_space<vmem>>, %arg4: memref<128x128xbf16, #tpu.memory_space<vmem>>, %arg5: memref<1x128xf32, #tpu.memory_space<vmem>>, %arg6: memref<1x128xf32, #tpu.memory_space<vmem>>, %arg7: memref<16x128xf32, #tpu.memory_space<vmem>>, %arg8: memref<8x16x128xf32, #tpu.memory_space<vmem>>, %arg9: memref<16x128xf32, #tpu.memory_space<vmem>>, %arg10: memref<16x128xf32, #tpu.memory_space<vmem>>) attributes {dimension_semantics = [#tpu.dimension_semantics<parallel>, #tpu.dimension_semantics<arbitrary>], iteration_bounds = array<i64: 1, 1>, scalar_prefetch = 0 : i64, scratch_operands = 3 : i64, tpu.core_type = #tpu.core_type<tc>, window_params = [{transform_indices = @transform_0, window_bounds = array<i64: 8, 16, 128>}, {pipeline_mode = #tpu.pipeline_mode<synchronous>, transform_indices = @transform_1, window_bounds = array<i64: 128, 128>}, {pipeline_mode = #tpu.pipeline_mode<synchronous>, transform_indices = @transform_2, window_bounds = array<i64: 128, 128>}, {pipeline_mode = #tpu.pipeline_mode<synchronous>, transform_indices = @transform_3, window_bounds = array<i64: 1, 128>}, {pipeline_mode = #tpu.pipeline_mode<synchronous>, transform_indices = @transform_4, window_bounds = array<i64: 1, 128>}, {transform_indices = @transform_5, window_bounds = array<i64: 16, 128>}]} {
    %c0 = arith.constant 0 : index
    %c0_0 = arith.constant 0 : index
    %c0_1 = arith.constant 0 : index
    %0 = vector.load %arg2[%c0, %c0_0, %c0_1] : memref<8x16x128xbf16, #tpu.memory_space<vmem>>, vector<8x16x128xbf16>
    %1 = vector.shape_cast %0 : vector<8x16x128xbf16> to vector<128x128xbf16>
    %c0_2 = arith.constant 0 : index
    %c0_3 = arith.constant 0 : index
    %2 = vector.load %arg3[%c0_2, %c0_3] : memref<128x128xbf16, #tpu.memory_space<vmem>>, vector<128x128xbf16>
    %cst = arith.constant dense<0.000000e+00> : vector<128x128xf32>
    %3 = tpu.matmul %1, %2, %cst {dimension_numbers = #tpu.dot_dimension_numbers<[1], [0], [0], [1], [0, 0, 1, 1], [], []>} : vector<128x128xbf16>, vector<128x128xbf16>, vector<128x128xf32> -> vector<128x128xf32>
    %c0_4 = arith.constant 0 : index
    %c0_5 = arith.constant 0 : index
    %4 = vector.load %arg5[%c0_4, %c0_5] : memref<1x128xf32, #tpu.memory_space<vmem>>, vector<1x128xf32>
    %5 = vector.broadcast %4 : vector<1x128xf32> to vector<128x128xf32>
    %6 = arith.addf %3, %5 : vector<128x128xf32>
    %7 = vector.shape_cast %6 : vector<128x128xf32> to vector<8x16x128xf32>
    %c0_6 = arith.constant 0 : index
    %c0_7 = arith.constant 0 : index
    %c0_8 = arith.constant 0 : index
    %8 = vector.load %arg8[%c0_6, %c0_7, %c0_8] : memref<8x16x128xf32, #tpu.memory_space<vmem>>, vector<8x16x128xf32>
    tpu.vector_store %arg8[%c0_6, %c0_7, %c0_8], %7 {strides = array<i32>} : memref<8x16x128xf32, #tpu.memory_space<vmem>>, vector<8x16x128xf32>,
    %c0_i32 = arith.constant 0 : i32
    %9 = arith.cmpi eq, %arg1, %c0_i32 : i32
    %10 = arith.extui %9 : i1 to i32
    %c0_i32_9 = arith.constant 0 : i32
    %11 = arith.cmpi ne, %10, %c0_i32_9 : i32
    scf.if %11 {
      %cst_86 = arith.constant 0.000000e+00 : f32
      %120 = vector.broadcast %cst_86 : f32 to vector<16x128xf32>
      %c0_87 = arith.constant 0 : index
      %c0_88 = arith.constant 0 : index
      %121 = vector.load %arg9[%c0_87, %c0_88] : memref<16x128xf32, #tpu.memory_space<vmem>>, vector<16x128xf32>
      tpu.vector_store %arg9[%c0_87, %c0_88], %120 {strides = array<i32>} : memref<16x128xf32, #tpu.memory_space<vmem>>, vector<16x128xf32>,
      %cst_89 = arith.constant 0.000000e+00 : f32
      %122 = vector.broadcast %cst_89 : f32 to vector<16x128xf32>
      %c0_90 = arith.constant 0 : index
      %c0_91 = arith.constant 0 : index
      %123 = vector.load %arg10[%c0_90, %c0_91] : memref<16x128xf32, #tpu.memory_space<vmem>>, vector<16x128xf32>
      tpu.vector_store %arg10[%c0_90, %c0_91], %122 {strides = array<i32>} : memref<16x128xf32, #tpu.memory_space<vmem>>, vector<16x128xf32>,
    } else {
    }
    %c0_10 = arith.constant 0 : index
    %c0_11 = arith.constant 0 : index
    %12 = vector.load %arg4[%c0_10, %c0_11] : memref<128x128xbf16, #tpu.memory_space<vmem>>, vector<128x128xbf16>
    %c0_12 = arith.constant 0 : index
    %c0_13 = arith.constant 0 : index
    %13 = vector.load %arg6[%c0_12, %c0_13] : memref<1x128xf32, #tpu.memory_space<vmem>>, vector<1x128xf32>
    %c0_i32_14 = arith.constant 0 : i32
    %14 = arith.cmpi sgt, %arg1, %c0_i32_14 : i32
    %15 = arith.extui %14 : i1 to i32
    %16 = arith.sitofp %15 : i32 to f32
    %17 = vector.broadcast %16 : f32 to vector<1x128xf32>
    %18 = arith.mulf %17, %13 : vector<1x128xf32>
    %c0_15 = arith.constant 0 : index
    %c0_16 = arith.constant 0 : index
    %19 = vector.load %arg9[%c0_15, %c0_16] : memref<16x128xf32, #tpu.memory_space<vmem>>, vector<16x128xf32>
    %c0_17 = arith.constant 0 : index
    %c0_18 = arith.constant 0 : index
    %c0_19 = arith.constant 0 : index
    %20 = vector.load %arg8[%c0_17, %c0_18, %c0_19] : memref<8x16x128xf32, #tpu.memory_space<vmem>>, vector<1x16x128xf32>
    %21 = vector.shape_cast %20 : vector<1x16x128xf32> to vector<16x128xf32>
    %22 = arith.truncf %19 : vector<16x128xf32> to vector<16x128xbf16>
    %cst_20 = arith.constant dense<0.000000e+00> : vector<16x128xf32>
    %23 = tpu.matmul %22, %12, %cst_20 {dimension_numbers = #tpu.dot_dimension_numbers<[1], [0], [0], [1], [0, 0, 1, 1], [], []>} : vector<16x128xbf16>, vector<128x128xbf16>, vector<16x128xf32> -> vector<16x128xf32>
    %24 = arith.addf %21, %23 : vector<16x128xf32>
    %25 = vector.broadcast %18 : vector<1x128xf32> to vector<16x128xf32>
    %26 = arith.addf %24, %25 : vector<16x128xf32>
    %cst_21 = arith.constant 0.000000e+00 : f32
    %27 = vector.broadcast %cst_21 : f32 to vector<16x128xf32>
    %28 = arith.maximumf %26, %27 : vector<16x128xf32>
    %c0_22 = arith.constant 0 : index
    %c0_23 = arith.constant 0 : index
    %29 = vector.load %arg10[%c0_22, %c0_23] : memref<16x128xf32, #tpu.memory_space<vmem>>, vector<16x128xf32>
    %30 = arith.addf %29, %28 : vector<16x128xf32>
    %c0_24 = arith.constant 0 : index
    %c0_25 = arith.constant 0 : index
    %31 = vector.load %arg10[%c0_24, %c0_25] : memref<16x128xf32, #tpu.memory_space<vmem>>, vector<16x128xf32>
    tpu.vector_store %arg10[%c0_24, %c0_25], %30 {strides = array<i32>} : memref<16x128xf32, #tpu.memory_space<vmem>>, vector<16x128xf32>,
    %c1 = arith.constant 1 : index
    %c0_26 = arith.constant 0 : index
    %c0_27 = arith.constant 0 : index
    %32 = vector.load %arg8[%c1, %c0_26, %c0_27] : memref<8x16x128xf32, #tpu.memory_space<vmem>>, vector<1x16x128xf32>
    %33 = vector.shape_cast %32 : vector<1x16x128xf32> to vector<16x128xf32>
    %34 = arith.truncf %28 : vector<16x128xf32> to vector<16x128xbf16>
    %cst_28 = arith.constant dense<0.000000e+00> : vector<16x128xf32>
    %35 = tpu.matmul %34, %12, %cst_28 {dimension_numbers = #tpu.dot_dimension_numbers<[1], [0], [0], [1], [0, 0, 1, 1], [], []>} : vector<16x128xbf16>, vector<128x128xbf16>, vector<16x128xf32> -> vector<16x128xf32>
    %36 = arith.addf %33, %35 : vector<16x128xf32>
    %37 = vector.broadcast %13 : vector<1x128xf32> to vector<16x128xf32>
    %38 = arith.addf %36, %37 : vector<16x128xf32>
    %cst_29 = arith.constant 0.000000e+00 : f32
    %39 = vector.broadcast %cst_29 : f32 to vector<16x128xf32>
    %40 = arith.maximumf %38, %39 : vector<16x128xf32>
    %c0_30 = arith.constant 0 : index
    %c0_31 = arith.constant 0 : index
    %41 = vector.load %arg10[%c0_30, %c0_31] : memref<16x128xf32, #tpu.memory_space<vmem>>, vector<16x128xf32>
    %42 = arith.addf %41, %40 : vector<16x128xf32>
    %c0_32 = arith.constant 0 : index
    %c0_33 = arith.constant 0 : index
    %43 = vector.load %arg10[%c0_32, %c0_33] : memref<16x128xf32, #tpu.memory_space<vmem>>, vector<16x128xf32>
    tpu.vector_store %arg10[%c0_32, %c0_33], %42 {strides = array<i32>} : memref<16x128xf32, #tpu.memory_space<vmem>>, vector<16x128xf32>,
    %c2 = arith.constant 2 : index
    %c0_34 = arith.constant 0 : index
    %c0_35 = arith.constant 0 : index
    %44 = vector.load %arg8[%c2, %c0_34, %c0_35] : memref<8x16x128xf32, #tpu.memory_space<vmem>>, vector<1x16x128xf32>
    %45 = vector.shape_cast %44 : vector<1x16x128xf32> to vector<16x128xf32>
    %46 = arith.truncf %40 : vector<16x128xf32> to vector<16x128xbf16>
    %cst_36 = arith.constant dense<0.000000e+00> : vector<16x128xf32>
    %47 = tpu.matmul %46, %12, %cst_36 {dimension_numbers = #tpu.dot_dimension_numbers<[1], [0], [0], [1], [0, 0, 1, 1], [], []>} : vector<16x128xbf16>, vector<128x128xbf16>, vector<16x128xf32> -> vector<16x128xf32>
    %48 = arith.addf %45, %47 : vector<16x128xf32>
    %49 = vector.broadcast %13 : vector<1x128xf32> to vector<16x128xf32>
    %50 = arith.addf %48, %49 : vector<16x128xf32>
    %cst_37 = arith.constant 0.000000e+00 : f32
    %51 = vector.broadcast %cst_37 : f32 to vector<16x128xf32>
    %52 = arith.maximumf %50, %51 : vector<16x128xf32>
    %c0_38 = arith.constant 0 : index
    %c0_39 = arith.constant 0 : index
    %53 = vector.load %arg10[%c0_38, %c0_39] : memref<16x128xf32, #tpu.memory_space<vmem>>, vector<16x128xf32>
    %54 = arith.addf %53, %52 : vector<16x128xf32>
    %c0_40 = arith.constant 0 : index
    %c0_41 = arith.constant 0 : index
    %55 = vector.load %arg10[%c0_40, %c0_41] : memref<16x128xf32, #tpu.memory_space<vmem>>, vector<16x128xf32>
    tpu.vector_store %arg10[%c0_40, %c0_41], %54 {strides = array<i32>} : memref<16x128xf32, #tpu.memory_space<vmem>>, vector<16x128xf32>,
    %c3 = arith.constant 3 : index
    %c0_42 = arith.constant 0 : index
    %c0_43 = arith.constant 0 : index
    %56 = vector.load %arg8[%c3, %c0_42, %c0_43] : memref<8x16x128xf32, #tpu.memory_space<vmem>>, vector<1x16x128xf32>
    %57 = vector.shape_cast %56 : vector<1x16x128xf32> to vector<16x128xf32>
    %58 = arith.truncf %52 : vector<16x128xf32> to vector<16x128xbf16>
    %cst_44 = arith.constant dense<0.000000e+00> : vector<16x128xf32>
    %59 = tpu.matmul %58, %12, %cst_44 {dimension_numbers = #tpu.dot_dimension_numbers<[1], [0], [0], [1], [0, 0, 1, 1], [], []>} : vector<16x128xbf16>, vector<128x128xbf16>, vector<16x128xf32> -> vector<16x128xf32>
    %60 = arith.addf %57, %59 : vector<16x128xf32>
    %61 = vector.broadcast %13 : vector<1x128xf32> to vector<16x128xf32>
    %62 = arith.addf %60, %61 : vector<16x128xf32>
    %cst_45 = arith.constant 0.000000e+00 : f32
    %63 = vector.broadcast %cst_45 : f32 to vector<16x128xf32>
    %64 = arith.maximumf %62, %63 : vector<16x128xf32>
    %c0_46 = arith.constant 0 : index
    %c0_47 = arith.constant 0 : index
    %65 = vector.load %arg10[%c0_46, %c0_47] : memref<16x128xf32, #tpu.memory_space<vmem>>, vector<16x128xf32>
    %66 = arith.addf %65, %64 : vector<16x128xf32>
    %c0_48 = arith.constant 0 : index
    %c0_49 = arith.constant 0 : index
    %67 = vector.load %arg10[%c0_48, %c0_49] : memref<16x128xf32, #tpu.memory_space<vmem>>, vector<16x128xf32>
    tpu.vector_store %arg10[%c0_48, %c0_49], %66 {strides = array<i32>} : memref<16x128xf32, #tpu.memory_space<vmem>>, vector<16x128xf32>,
    %c4 = arith.constant 4 : index
    %c0_50 = arith.constant 0 : index
    %c0_51 = arith.constant 0 : index
    %68 = vector.load %arg8[%c4, %c0_50, %c0_51] : memref<8x16x128xf32, #tpu.memory_space<vmem>>, vector<1x16x128xf32>
    %69 = vector.shape_cast %68 : vector<1x16x128xf32> to vector<16x128xf32>
    %70 = arith.truncf %64 : vector<16x128xf32> to vector<16x128xbf16>
    %cst_52 = arith.constant dense<0.000000e+00> : vector<16x128xf32>
    %71 = tpu.matmul %70, %12, %cst_52 {dimension_numbers = #tpu.dot_dimension_numbers<[1], [0], [0], [1], [0, 0, 1, 1], [], []>} : vector<16x128xbf16>, vector<128x128xbf16>, vector<16x128xf32> -> vector<16x128xf32>
    %72 = arith.addf %69, %71 : vector<16x128xf32>
    %73 = vector.broadcast %13 : vector<1x128xf32> to vector<16x128xf32>
    %74 = arith.addf %72, %73 : vector<16x128xf32>
    %cst_53 = arith.constant 0.000000e+00 : f32
    %75 = vector.broadcast %cst_53 : f32 to vector<16x128xf32>
    %76 = arith.maximumf %74, %75 : vector<16x128xf32>
    %c0_54 = arith.constant 0 : index
    %c0_55 = arith.constant 0 : index
    %77 = vector.load %arg10[%c0_54, %c0_55] : memref<16x128xf32, #tpu.memory_space<vmem>>, vector<16x128xf32>
    %78 = arith.addf %77, %76 : vector<16x128xf32>
    %c0_56 = arith.constant 0 : index
    %c0_57 = arith.constant 0 : index
    %79 = vector.load %arg10[%c0_56, %c0_57] : memref<16x128xf32, #tpu.memory_space<vmem>>, vector<16x128xf32>
    tpu.vector_store %arg10[%c0_56, %c0_57], %78 {strides = array<i32>} : memref<16x128xf32, #tpu.memory_space<vmem>>, vector<16x128xf32>,
    %c5 = arith.constant 5 : index
    %c0_58 = arith.constant 0 : index
    %c0_59 = arith.constant 0 : index
    %80 = vector.load %arg8[%c5, %c0_58, %c0_59] : memref<8x16x128xf32, #tpu.memory_space<vmem>>, vector<1x16x128xf32>
    %81 = vector.shape_cast %80 : vector<1x16x128xf32> to vector<16x128xf32>
    %82 = arith.truncf %76 : vector<16x128xf32> to vector<16x128xbf16>
    %cst_60 = arith.constant dense<0.000000e+00> : vector<16x128xf32>
    %83 = tpu.matmul %82, %12, %cst_60 {dimension_numbers = #tpu.dot_dimension_numbers<[1], [0], [0], [1], [0, 0, 1, 1], [], []>} : vector<16x128xbf16>, vector<128x128xbf16>, vector<16x128xf32> -> vector<16x128xf32>
    %84 = arith.addf %81, %83 : vector<16x128xf32>
    %85 = vector.broadcast %13 : vector<1x128xf32> to vector<16x128xf32>
    %86 = arith.addf %84, %85 : vector<16x128xf32>
    %cst_61 = arith.constant 0.000000e+00 : f32
    %87 = vector.broadcast %cst_61 : f32 to vector<16x128xf32>
    %88 = arith.maximumf %86, %87 : vector<16x128xf32>
    %c0_62 = arith.constant 0 : index
    %c0_63 = arith.constant 0 : index
    %89 = vector.load %arg10[%c0_62, %c0_63] : memref<16x128xf32, #tpu.memory_space<vmem>>, vector<16x128xf32>
    %90 = arith.addf %89, %88 : vector<16x128xf32>
    %c0_64 = arith.constant 0 : index
    %c0_65 = arith.constant 0 : index
    %91 = vector.load %arg10[%c0_64, %c0_65] : memref<16x128xf32, #tpu.memory_space<vmem>>, vector<16x128xf32>
    tpu.vector_store %arg10[%c0_64, %c0_65], %90 {strides = array<i32>} : memref<16x128xf32, #tpu.memory_space<vmem>>, vector<16x128xf32>,
    %c6 = arith.constant 6 : index
    %c0_66 = arith.constant 0 : index
    %c0_67 = arith.constant 0 : index
    %92 = vector.load %arg8[%c6, %c0_66, %c0_67] : memref<8x16x128xf32, #tpu.memory_space<vmem>>, vector<1x16x128xf32>
    %93 = vector.shape_cast %92 : vector<1x16x128xf32> to vector<16x128xf32>
    %94 = arith.truncf %88 : vector<16x128xf32> to vector<16x128xbf16>
    %cst_68 = arith.constant dense<0.000000e+00> : vector<16x128xf32>
    %95 = tpu.matmul %94, %12, %cst_68 {dimension_numbers = #tpu.dot_dimension_numbers<[1], [0], [0], [1], [0, 0, 1, 1], [], []>} : vector<16x128xbf16>, vector<128x128xbf16>, vector<16x128xf32> -> vector<16x128xf32>
    %96 = arith.addf %93, %95 : vector<16x128xf32>
    %97 = vector.broadcast %13 : vector<1x128xf32> to vector<16x128xf32>
    %98 = arith.addf %96, %97 : vector<16x128xf32>
    %cst_69 = arith.constant 0.000000e+00 : f32
    %99 = vector.broadcast %cst_69 : f32 to vector<16x128xf32>
    %100 = arith.maximumf %98, %99 : vector<16x128xf32>
    %c0_70 = arith.constant 0 : index
    %c0_71 = arith.constant 0 : index
    %101 = vector.load %arg10[%c0_70, %c0_71] : memref<16x128xf32, #tpu.memory_space<vmem>>, vector<16x128xf32>
    %102 = arith.addf %101, %100 : vector<16x128xf32>
    %c0_72 = arith.constant 0 : index
    %c0_73 = arith.constant 0 : index
    %103 = vector.load %arg10[%c0_72, %c0_73] : memref<16x128xf32, #tpu.memory_space<vmem>>, vector<16x128xf32>
    tpu.vector_store %arg10[%c0_72, %c0_73], %102 {strides = array<i32>} : memref<16x128xf32, #tpu.memory_space<vmem>>, vector<16x128xf32>,
    %c7 = arith.constant 7 : index
    %c0_74 = arith.constant 0 : index
    %c0_75 = arith.constant 0 : index
    %104 = vector.load %arg8[%c7, %c0_74, %c0_75] : memref<8x16x128xf32, #tpu.memory_space<vmem>>, vector<1x16x128xf32>
    %105 = vector.shape_cast %104 : vector<1x16x128xf32> to vector<16x128xf32>
    %106 = arith.truncf %100 : vector<16x128xf32> to vector<16x128xbf16>
    %cst_76 = arith.constant dense<0.000000e+00> : vector<16x128xf32>
    %107 = tpu.matmul %106, %12, %cst_76 {dimension_numbers = #tpu.dot_dimension_numbers<[1], [0], [0], [1], [0, 0, 1, 1], [], []>} : vector<16x128xbf16>, vector<128x128xbf16>, vector<16x128xf32> -> vector<16x128xf32>
    %108 = arith.addf %105, %107 : vector<16x128xf32>
    %109 = vector.broadcast %13 : vector<1x128xf32> to vector<16x128xf32>
    %110 = arith.addf %108, %109 : vector<16x128xf32>
    %cst_77 = arith.constant 0.000000e+00 : f32
    %111 = vector.broadcast %cst_77 : f32 to vector<16x128xf32>
    %112 = arith.maximumf %110, %111 : vector<16x128xf32>
    %c0_78 = arith.constant 0 : index
    %c0_79 = arith.constant 0 : index
    %113 = vector.load %arg10[%c0_78, %c0_79] : memref<16x128xf32, #tpu.memory_space<vmem>>, vector<16x128xf32>
    %114 = arith.addf %113, %112 : vector<16x128xf32>
    %c0_80 = arith.constant 0 : index
    %c0_81 = arith.constant 0 : index
    %115 = vector.load %arg10[%c0_80, %c0_81] : memref<16x128xf32, #tpu.memory_space<vmem>>, vector<16x128xf32>
    tpu.vector_store %arg10[%c0_80, %c0_81], %114 {strides = array<i32>} : memref<16x128xf32, #tpu.memory_space<vmem>>, vector<16x128xf32>,
    %c0_82 = arith.constant 0 : index
    %c0_83 = arith.constant 0 : index
    %116 = vector.load %arg9[%c0_82, %c0_83] : memref<16x128xf32, #tpu.memory_space<vmem>>, vector<16x128xf32>
    tpu.vector_store %arg9[%c0_82, %c0_83], %112 {strides = array<i32>} : memref<16x128xf32, #tpu.memory_space<vmem>>, vector<16x128xf32>,
    %c0_i32_84 = arith.constant 0 : i32
    %117 = arith.cmpi eq, %arg1, %c0_i32_84 : i32
    %118 = arith.extui %117 : i1 to i32
    %c0_i32_85 = arith.constant 0 : i32
    %119 = arith.cmpi ne, %118, %c0_i32_85 : i32
    scf.if %119 {
      %c0_86 = arith.constant 0 : index
      %c0_87 = arith.constant 0 : index
      %120 = vector.load %arg10[%c0_86, %c0_87] : memref<16x128xf32, #tpu.memory_space<vmem>>, vector<16x128xf32>
      %cst_88 = arith.constant 1.250000e-01 : f32
      %121 = vector.broadcast %cst_88 : f32 to vector<16x128xf32>
      %122 = arith.mulf %120, %121 : vector<16x128xf32>
      %c0_89 = arith.constant 0 : index
      %c0_90 = arith.constant 0 : index
      %123 = vector.load %arg7[%c0_89, %c0_90] : memref<16x128xf32, #tpu.memory_space<vmem>>, vector<16x128xf32>
      tpu.vector_store %arg7[%c0_89, %c0_90], %122 {strides = array<i32>} : memref<16x128xf32, #tpu.memory_space<vmem>>, vector<16x128xf32>,
    } else {
    }
    return
  }
  func.func @transform_0(%arg0: i32, %arg1: i32) -> (i32, i32, i32) {
    %c0_i32 = arith.constant 0 : i32
    %c0_i32_0 = arith.constant 0 : i32
    return %arg1, %arg0, %c0_i32 : i32, i32, i32
  }
  func.func @transform_1(%arg0: i32, %arg1: i32) -> (i32, i32) {
    %c0_i32 = arith.constant 0 : i32
    %c0_i32_0 = arith.constant 0 : i32
    %c0_i32_1 = arith.constant 0 : i32
    return %c0_i32, %c0_i32_0 : i32, i32
  }
  func.func @transform_2(%arg0: i32, %arg1: i32) -> (i32, i32) {
    %c0_i32 = arith.constant 0 : i32
    %c0_i32_0 = arith.constant 0 : i32
    %c0_i32_1 = arith.constant 0 : i32
    return %c0_i32, %c0_i32_0 : i32, i32
  }
  func.func @transform_3(%arg0: i32, %arg1: i32) -> (i32, i32) {
    %c0_i32 = arith.constant 0 : i32
    %c0_i32_0 = arith.constant 0 : i32
    %c0_i32_1 = arith.constant 0 : i32
    return %c0_i32, %c0_i32_0 : i32, i32
  }
  func.func @transform_4(%arg0: i32, %arg1: i32) -> (i32, i32) {
    %c0_i32 = arith.constant 0 : i32
    %c0_i32_0 = arith.constant 0 : i32
    %c0_i32_1 = arith.constant 0 : i32
    return %c0_i32, %c0_i32_0 : i32, i32
  }
  func.func @transform_5(%arg0: i32, %arg1: i32) -> (i32, i32) {
    %c0_i32 = arith.constant 0 : i32
    %c0_i32_0 = arith.constant 0 : i32
    return %arg0, %c0_i32 : i32, i32
  }
}

module attributes {stable_mosaic.version = 11 : i64} {
  func.func @kernel(%arg0: i32, %arg1: i32, %arg2: memref<8x16x128xbf16, #tpu.memory_space<vmem>>, %arg3: memref<128x128xbf16, #tpu.memory_space<vmem>>, %arg4: memref<128x128xbf16, #tpu.memory_space<vmem>>, %arg5: memref<1x128xf32, #tpu.memory_space<vmem>>, %arg6: memref<1x128xf32, #tpu.memory_space<vmem>>, %arg7: memref<16x128xf32, #tpu.memory_space<vmem>>, %arg8: memref<8x16x128xf32, #tpu.memory_space<vmem>>, %arg9: memref<16x128xf32, #tpu.memory_space<vmem>>, %arg10: memref<16x128xf32, #tpu.memory_space<vmem>>) attributes {dimension_semantics = [#tpu.dimension_semantics<parallel>, #tpu.dimension_semantics<arbitrary>], iteration_bounds = array<i64: 1, 1>, scalar_prefetch = 0 : i64, scratch_operands = 3 : i64, tpu.core_type = #tpu.core_type<tc>, window_params = [{transform_indices = @transform_0, window_bounds = array<i64: 8, 16, 128>}, {pipeline_mode = #tpu.pipeline_mode<synchronous>, transform_indices = @transform_1, window_bounds = array<i64: 128, 128>}, {pipeline_mode = #tpu.pipeline_mode<synchronous>, transform_indices = @transform_2, window_bounds = array<i64: 128, 128>}, {pipeline_mode = #tpu.pipeline_mode<synchronous>, transform_indices = @transform_3, window_bounds = array<i64: 1, 128>}, {pipeline_mode = #tpu.pipeline_mode<synchronous>, transform_indices = @transform_4, window_bounds = array<i64: 1, 128>}, {transform_indices = @transform_5, window_bounds = array<i64: 16, 128>}]} {
    %c0 = arith.constant 0 : index
    %c0_0 = arith.constant 0 : index
    %c0_1 = arith.constant 0 : index
    %0 = vector.load %arg2[%c0, %c0_0, %c0_1] : memref<8x16x128xbf16, #tpu.memory_space<vmem>>, vector<8x16x128xbf16>
    %1 = vector.shape_cast %0 : vector<8x16x128xbf16> to vector<128x128xbf16>
    %c0_2 = arith.constant 0 : index
    %c0_3 = arith.constant 0 : index
    %2 = vector.load %arg3[%c0_2, %c0_3] : memref<128x128xbf16, #tpu.memory_space<vmem>>, vector<128x128xbf16>
    %cst = arith.constant dense<0.000000e+00> : vector<128x128xf32>
    %3 = tpu.matmul %1, %2, %cst {dimension_numbers = #tpu.dot_dimension_numbers<[1], [0], [0], [1], [0, 0, 1, 1], [], []>} : vector<128x128xbf16>, vector<128x128xbf16>, vector<128x128xf32> -> vector<128x128xf32>
    %c0_4 = arith.constant 0 : index
    %c0_5 = arith.constant 0 : index
    %4 = vector.load %arg5[%c0_4, %c0_5] : memref<1x128xf32, #tpu.memory_space<vmem>>, vector<1x128xf32>
    %5 = vector.broadcast %4 : vector<1x128xf32> to vector<128x128xf32>
    %6 = arith.addf %3, %5 : vector<128x128xf32>
    %7 = vector.shape_cast %6 : vector<128x128xf32> to vector<8x16x128xf32>
    %c0_6 = arith.constant 0 : index
    %c0_7 = arith.constant 0 : index
    %c0_8 = arith.constant 0 : index
    %8 = vector.load %arg8[%c0_6, %c0_7, %c0_8] : memref<8x16x128xf32, #tpu.memory_space<vmem>>, vector<8x16x128xf32>
    tpu.vector_store %arg8[%c0_6, %c0_7, %c0_8], %7 {strides = array<i32>} : memref<8x16x128xf32, #tpu.memory_space<vmem>>, vector<8x16x128xf32>,
    %c0_i32 = arith.constant 0 : i32
    %9 = arith.cmpi eq, %arg1, %c0_i32 : i32
    %10 = arith.extui %9 : i1 to i32
    %c0_i32_9 = arith.constant 0 : i32
    %11 = arith.cmpi ne, %10, %c0_i32_9 : i32
    scf.if %11 {
      %cst_86 = arith.constant 0.000000e+00 : f32
      %120 = vector.broadcast %cst_86 : f32 to vector<16x128xf32>
      %c0_87 = arith.constant 0 : index
      %c0_88 = arith.constant 0 : index
      %121 = vector.load %arg9[%c0_87, %c0_88] : memref<16x128xf32, #tpu.memory_space<vmem>>, vector<16x128xf32>
      tpu.vector_store %arg9[%c0_87, %c0_88], %120 {strides = array<i32>} : memref<16x128xf32, #tpu.memory_space<vmem>>, vector<16x128xf32>,
      %cst_89 = arith.constant 0.000000e+00 : f32
      %122 = vector.broadcast %cst_89 : f32 to vector<16x128xf32>
      %c0_90 = arith.constant 0 : index
      %c0_91 = arith.constant 0 : index
      %123 = vector.load %arg10[%c0_90, %c0_91] : memref<16x128xf32, #tpu.memory_space<vmem>>, vector<16x128xf32>
      tpu.vector_store %arg10[%c0_90, %c0_91], %122 {strides = array<i32>} : memref<16x128xf32, #tpu.memory_space<vmem>>, vector<16x128xf32>,
    } else {
    }
    %c0_10 = arith.constant 0 : index
    %c0_11 = arith.constant 0 : index
    %12 = vector.load %arg4[%c0_10, %c0_11] : memref<128x128xbf16, #tpu.memory_space<vmem>>, vector<128x128xbf16>
    %c0_12 = arith.constant 0 : index
    %c0_13 = arith.constant 0 : index
    %13 = vector.load %arg6[%c0_12, %c0_13] : memref<1x128xf32, #tpu.memory_space<vmem>>, vector<1x128xf32>
    %c0_i32_14 = arith.constant 0 : i32
    %14 = arith.cmpi sgt, %arg1, %c0_i32_14 : i32
    %15 = arith.extui %14 : i1 to i32
    %16 = arith.sitofp %15 : i32 to f32
    %17 = vector.broadcast %16 : f32 to vector<1x128xf32>
    %18 = arith.mulf %17, %13 : vector<1x128xf32>
    %c0_15 = arith.constant 0 : index
    %c0_16 = arith.constant 0 : index
    %19 = vector.load %arg9[%c0_15, %c0_16] : memref<16x128xf32, #tpu.memory_space<vmem>>, vector<16x128xf32>
    %c0_17 = arith.constant 0 : index
    %c0_18 = arith.constant 0 : index
    %c0_19 = arith.constant 0 : index
    %20 = vector.load %arg8[%c0_17, %c0_18, %c0_19] : memref<8x16x128xf32, #tpu.memory_space<vmem>>, vector<1x16x128xf32>
    %21 = vector.shape_cast %20 : vector<1x16x128xf32> to vector<16x128xf32>
    %22 = arith.truncf %19 : vector<16x128xf32> to vector<16x128xbf16>
    %cst_20 = arith.constant dense<0.000000e+00> : vector<16x128xf32>
    %23 = tpu.matmul %22, %12, %cst_20 {dimension_numbers = #tpu.dot_dimension_numbers<[1], [0], [0], [1], [0, 0, 1, 1], [], []>} : vector<16x128xbf16>, vector<128x128xbf16>, vector<16x128xf32> -> vector<16x128xf32>
    %24 = arith.addf %21, %23 : vector<16x128xf32>
    %25 = vector.broadcast %18 : vector<1x128xf32> to vector<16x128xf32>
    %26 = arith.addf %24, %25 : vector<16x128xf32>
    %cst_21 = arith.constant 0.000000e+00 : f32
    %27 = vector.broadcast %cst_21 : f32 to vector<16x128xf32>
    %28 = arith.maximumf %26, %27 : vector<16x128xf32>
    %c0_22 = arith.constant 0 : index
    %c0_23 = arith.constant 0 : index
    %29 = vector.load %arg10[%c0_22, %c0_23] : memref<16x128xf32, #tpu.memory_space<vmem>>, vector<16x128xf32>
    %30 = arith.addf %29, %28 : vector<16x128xf32>
    %c0_24 = arith.constant 0 : index
    %c0_25 = arith.constant 0 : index
    %31 = vector.load %arg10[%c0_24, %c0_25] : memref<16x128xf32, #tpu.memory_space<vmem>>, vector<16x128xf32>
    tpu.vector_store %arg10[%c0_24, %c0_25], %30 {strides = array<i32>} : memref<16x128xf32, #tpu.memory_space<vmem>>, vector<16x128xf32>,
    %c1 = arith.constant 1 : index
    %c0_26 = arith.constant 0 : index
    %c0_27 = arith.constant 0 : index
    %32 = vector.load %arg8[%c1, %c0_26, %c0_27] : memref<8x16x128xf32, #tpu.memory_space<vmem>>, vector<1x16x128xf32>
    %33 = vector.shape_cast %32 : vector<1x16x128xf32> to vector<16x128xf32>
    %34 = arith.truncf %28 : vector<16x128xf32> to vector<16x128xbf16>
    %cst_28 = arith.constant dense<0.000000e+00> : vector<16x128xf32>
    %35 = tpu.matmul %34, %12, %cst_28 {dimension_numbers = #tpu.dot_dimension_numbers<[1], [0], [0], [1], [0, 0, 1, 1], [], []>} : vector<16x128xbf16>, vector<128x128xbf16>, vector<16x128xf32> -> vector<16x128xf32>
    %36 = arith.addf %33, %35 : vector<16x128xf32>
    %37 = vector.broadcast %13 : vector<1x128xf32> to vector<16x128xf32>
    %38 = arith.addf %36, %37 : vector<16x128xf32>
    %cst_29 = arith.constant 0.000000e+00 : f32
    %39 = vector.broadcast %cst_29 : f32 to vector<16x128xf32>
    %40 = arith.maximumf %38, %39 : vector<16x128xf32>
    %c0_30 = arith.constant 0 : index
    %c0_31 = arith.constant 0 : index
    %41 = vector.load %arg10[%c0_30, %c0_31] : memref<16x128xf32, #tpu.memory_space<vmem>>, vector<16x128xf32>
    %42 = arith.addf %41, %40 : vector<16x128xf32>
    %c0_32 = arith.constant 0 : index
    %c0_33 = arith.constant 0 : index
    %43 = vector.load %arg10[%c0_32, %c0_33] : memref<16x128xf32, #tpu.memory_space<vmem>>, vector<16x128xf32>
    tpu.vector_store %arg10[%c0_32, %c0_33], %42 {strides = array<i32>} : memref<16x128xf32, #tpu.memory_space<vmem>>, vector<16x128xf32>,
    %c2 = arith.constant 2 : index
    %c0_34 = arith.constant 0 : index
    %c0_35 = arith.constant 0 : index
    %44 = vector.load %arg8[%c2, %c0_34, %c0_35] : memref<8x16x128xf32, #tpu.memory_space<vmem>>, vector<1x16x128xf32>
    %45 = vector.shape_cast %44 : vector<1x16x128xf32> to vector<16x128xf32>
    %46 = arith.truncf %40 : vector<16x128xf32> to vector<16x128xbf16>
    %cst_36 = arith.constant dense<0.000000e+00> : vector<16x128xf32>
    %47 = tpu.matmul %46, %12, %cst_36 {dimension_numbers = #tpu.dot_dimension_numbers<[1], [0], [0], [1], [0, 0, 1, 1], [], []>} : vector<16x128xbf16>, vector<128x128xbf16>, vector<16x128xf32> -> vector<16x128xf32>
    %48 = arith.addf %45, %47 : vector<16x128xf32>
    %49 = vector.broadcast %13 : vector<1x128xf32> to vector<16x128xf32>
    %50 = arith.addf %48, %49 : vector<16x128xf32>
    %cst_37 = arith.constant 0.000000e+00 : f32
    %51 = vector.broadcast %cst_37 : f32 to vector<16x128xf32>
    %52 = arith.maximumf %50, %51 : vector<16x128xf32>
    %c0_38 = arith.constant 0 : index
    %c0_39 = arith.constant 0 : index
    %53 = vector.load %arg10[%c0_38, %c0_39] : memref<16x128xf32, #tpu.memory_space<vmem>>, vector<16x128xf32>
    %54 = arith.addf %53, %52 : vector<16x128xf32>
    %c0_40 = arith.constant 0 : index
    %c0_41 = arith.constant 0 : index
    %55 = vector.load %arg10[%c0_40, %c0_41] : memref<16x128xf32, #tpu.memory_space<vmem>>, vector<16x128xf32>
    tpu.vector_store %arg10[%c0_40, %c0_41], %54 {strides = array<i32>} : memref<16x128xf32, #tpu.memory_space<vmem>>, vector<16x128xf32>,
    %c3 = arith.constant 3 : index
    %c0_42 = arith.constant 0 : index
    %c0_43 = arith.constant 0 : index
    %56 = vector.load %arg8[%c3, %c0_42, %c0_43] : memref<8x16x128xf32, #tpu.memory_space<vmem>>, vector<1x16x128xf32>
    %57 = vector.shape_cast %56 : vector<1x16x128xf32> to vector<16x128xf32>
    %58 = arith.truncf %52 : vector<16x128xf32> to vector<16x128xbf16>
    %cst_44 = arith.constant dense<0.000000e+00> : vector<16x128xf32>
    %59 = tpu.matmul %58, %12, %cst_44 {dimension_numbers = #tpu.dot_dimension_numbers<[1], [0], [0], [1], [0, 0, 1, 1], [], []>} : vector<16x128xbf16>, vector<128x128xbf16>, vector<16x128xf32> -> vector<16x128xf32>
    %60 = arith.addf %57, %59 : vector<16x128xf32>
    %61 = vector.broadcast %13 : vector<1x128xf32> to vector<16x128xf32>
    %62 = arith.addf %60, %61 : vector<16x128xf32>
    %cst_45 = arith.constant 0.000000e+00 : f32
    %63 = vector.broadcast %cst_45 : f32 to vector<16x128xf32>
    %64 = arith.maximumf %62, %63 : vector<16x128xf32>
    %c0_46 = arith.constant 0 : index
    %c0_47 = arith.constant 0 : index
    %65 = vector.load %arg10[%c0_46, %c0_47] : memref<16x128xf32, #tpu.memory_space<vmem>>, vector<16x128xf32>
    %66 = arith.addf %65, %64 : vector<16x128xf32>
    %c0_48 = arith.constant 0 : index
    %c0_49 = arith.constant 0 : index
    %67 = vector.load %arg10[%c0_48, %c0_49] : memref<16x128xf32, #tpu.memory_space<vmem>>, vector<16x128xf32>
    tpu.vector_store %arg10[%c0_48, %c0_49], %66 {strides = array<i32>} : memref<16x128xf32, #tpu.memory_space<vmem>>, vector<16x128xf32>,
    %c4 = arith.constant 4 : index
    %c0_50 = arith.constant 0 : index
    %c0_51 = arith.constant 0 : index
    %68 = vector.load %arg8[%c4, %c0_50, %c0_51] : memref<8x16x128xf32, #tpu.memory_space<vmem>>, vector<1x16x128xf32>
    %69 = vector.shape_cast %68 : vector<1x16x128xf32> to vector<16x128xf32>
    %70 = arith.truncf %64 : vector<16x128xf32> to vector<16x128xbf16>
    %cst_52 = arith.constant dense<0.000000e+00> : vector<16x128xf32>
    %71 = tpu.matmul %70, %12, %cst_52 {dimension_numbers = #tpu.dot_dimension_numbers<[1], [0], [0], [1], [0, 0, 1, 1], [], []>} : vector<16x128xbf16>, vector<128x128xbf16>, vector<16x128xf32> -> vector<16x128xf32>
    %72 = arith.addf %69, %71 : vector<16x128xf32>
    %73 = vector.broadcast %13 : vector<1x128xf32> to vector<16x128xf32>
    %74 = arith.addf %72, %73 : vector<16x128xf32>
    %cst_53 = arith.constant 0.000000e+00 : f32
    %75 = vector.broadcast %cst_53 : f32 to vector<16x128xf32>
    %76 = arith.maximumf %74, %75 : vector<16x128xf32>
    %c0_54 = arith.constant 0 : index
    %c0_55 = arith.constant 0 : index
    %77 = vector.load %arg10[%c0_54, %c0_55] : memref<16x128xf32, #tpu.memory_space<vmem>>, vector<16x128xf32>
    %78 = arith.addf %77, %76 : vector<16x128xf32>
    %c0_56 = arith.constant 0 : index
    %c0_57 = arith.constant 0 : index
    %79 = vector.load %arg10[%c0_56, %c0_57] : memref<16x128xf32, #tpu.memory_space<vmem>>, vector<16x128xf32>
    tpu.vector_store %arg10[%c0_56, %c0_57], %78 {strides = array<i32>} : memref<16x128xf32, #tpu.memory_space<vmem>>, vector<16x128xf32>,
    %c5 = arith.constant 5 : index
    %c0_58 = arith.constant 0 : index
    %c0_59 = arith.constant 0 : index
    %80 = vector.load %arg8[%c5, %c0_58, %c0_59] : memref<8x16x128xf32, #tpu.memory_space<vmem>>, vector<1x16x128xf32>
    %81 = vector.shape_cast %80 : vector<1x16x128xf32> to vector<16x128xf32>
    %82 = arith.truncf %76 : vector<16x128xf32> to vector<16x128xbf16>
    %cst_60 = arith.constant dense<0.000000e+00> : vector<16x128xf32>
    %83 = tpu.matmul %82, %12, %cst_60 {dimension_numbers = #tpu.dot_dimension_numbers<[1], [0], [0], [1], [0, 0, 1, 1], [], []>} : vector<16x128xbf16>, vector<128x128xbf16>, vector<16x128xf32> -> vector<16x128xf32>
    %84 = arith.addf %81, %83 : vector<16x128xf32>
    %85 = vector.broadcast %13 : vector<1x128xf32> to vector<16x128xf32>
    %86 = arith.addf %84, %85 : vector<16x128xf32>
    %cst_61 = arith.constant 0.000000e+00 : f32
    %87 = vector.broadcast %cst_61 : f32 to vector<16x128xf32>
    %88 = arith.maximumf %86, %87 : vector<16x128xf32>
    %c0_62 = arith.constant 0 : index
    %c0_63 = arith.constant 0 : index
    %89 = vector.load %arg10[%c0_62, %c0_63] : memref<16x128xf32, #tpu.memory_space<vmem>>, vector<16x128xf32>
    %90 = arith.addf %89, %88 : vector<16x128xf32>
    %c0_64 = arith.constant 0 : index
    %c0_65 = arith.constant 0 : index
    %91 = vector.load %arg10[%c0_64, %c0_65] : memref<16x128xf32, #tpu.memory_space<vmem>>, vector<16x128xf32>
    tpu.vector_store %arg10[%c0_64, %c0_65], %90 {strides = array<i32>} : memref<16x128xf32, #tpu.memory_space<vmem>>, vector<16x128xf32>,
    %c6 = arith.constant 6 : index
    %c0_66 = arith.constant 0 : index
    %c0_67 = arith.constant 0 : index
    %92 = vector.load %arg8[%c6, %c0_66, %c0_67] : memref<8x16x128xf32, #tpu.memory_space<vmem>>, vector<1x16x128xf32>
    %93 = vector.shape_cast %92 : vector<1x16x128xf32> to vector<16x128xf32>
    %94 = arith.truncf %88 : vector<16x128xf32> to vector<16x128xbf16>
    %cst_68 = arith.constant dense<0.000000e+00> : vector<16x128xf32>
    %95 = tpu.matmul %94, %12, %cst_68 {dimension_numbers = #tpu.dot_dimension_numbers<[1], [0], [0], [1], [0, 0, 1, 1], [], []>} : vector<16x128xbf16>, vector<128x128xbf16>, vector<16x128xf32> -> vector<16x128xf32>
    %96 = arith.addf %93, %95 : vector<16x128xf32>
    %97 = vector.broadcast %13 : vector<1x128xf32> to vector<16x128xf32>
    %98 = arith.addf %96, %97 : vector<16x128xf32>
    %cst_69 = arith.constant 0.000000e+00 : f32
    %99 = vector.broadcast %cst_69 : f32 to vector<16x128xf32>
    %100 = arith.maximumf %98, %99 : vector<16x128xf32>
    %c0_70 = arith.constant 0 : index
    %c0_71 = arith.constant 0 : index
    %101 = vector.load %arg10[%c0_70, %c0_71] : memref<16x128xf32, #tpu.memory_space<vmem>>, vector<16x128xf32>
    %102 = arith.addf %101, %100 : vector<16x128xf32>
    %c0_72 = arith.constant 0 : index
    %c0_73 = arith.constant 0 : index
    %103 = vector.load %arg10[%c0_72, %c0_73] : memref<16x128xf32, #tpu.memory_space<vmem>>, vector<16x128xf32>
    tpu.vector_store %arg10[%c0_72, %c0_73], %102 {strides = array<i32>} : memref<16x128xf32, #tpu.memory_space<vmem>>, vector<16x128xf32>,
    %c7 = arith.constant 7 : index
    %c0_74 = arith.constant 0 : index
    %c0_75 = arith.constant 0 : index
    %104 = vector.load %arg8[%c7, %c0_74, %c0_75] : memref<8x16x128xf32, #tpu.memory_space<vmem>>, vector<1x16x128xf32>
    %105 = vector.shape_cast %104 : vector<1x16x128xf32> to vector<16x128xf32>
    %106 = arith.truncf %100 : vector<16x128xf32> to vector<16x128xbf16>
    %cst_76 = arith.constant dense<0.000000e+00> : vector<16x128xf32>
    %107 = tpu.matmul %106, %12, %cst_76 {dimension_numbers = #tpu.dot_dimension_numbers<[1], [0], [0], [1], [0, 0, 1, 1], [], []>} : vector<16x128xbf16>, vector<128x128xbf16>, vector<16x128xf32> -> vector<16x128xf32>
    %108 = arith.addf %105, %107 : vector<16x128xf32>
    %109 = vector.broadcast %13 : vector<1x128xf32> to vector<16x128xf32>
    %110 = arith.addf %108, %109 : vector<16x128xf32>
    %cst_77 = arith.constant 0.000000e+00 : f32
    %111 = vector.broadcast %cst_77 : f32 to vector<16x128xf32>
    %112 = arith.maximumf %110, %111 : vector<16x128xf32>
    %c0_78 = arith.constant 0 : index
    %c0_79 = arith.constant 0 : index
    %113 = vector.load %arg10[%c0_78, %c0_79] : memref<16x128xf32, #tpu.memory_space<vmem>>, vector<16x128xf32>
    %114 = arith.addf %113, %112 : vector<16x128xf32>
    %c0_80 = arith.constant 0 : index
    %c0_81 = arith.constant 0 : index
    %115 = vector.load %arg10[%c0_80, %c0_81] : memref<16x128xf32, #tpu.memory_space<vmem>>, vector<16x128xf32>
    tpu.vector_store %arg10[%c0_80, %c0_81], %114 {strides = array<i32>} : memref<16x128xf32, #tpu.memory_space<vmem>>, vector<16x128xf32>,
    %c0_82 = arith.constant 0 : index
    %c0_83 = arith.constant 0 : index
    %116 = vector.load %arg9[%c0_82, %c0_83] : memref<16x128xf32, #tpu.memory_space<vmem>>, vector<16x128xf32>
    tpu.vector_store %arg9[%c0_82, %c0_83], %112 {strides = array<i32>} : memref<16x128xf32, #tpu.memory_space<vmem>>, vector<16x128xf32>,
    %c0_i32_84 = arith.constant 0 : i32
    %117 = arith.cmpi eq, %arg1, %c0_i32_84 : i32
    %118 = arith.extui %117 : i1 to i32
    %c0_i32_85 = arith.constant 0 : i32
    %119 = arith.cmpi ne, %118, %c0_i32_85 : i32
    scf.if %119 {
      %c0_86 = arith.constant 0 : index
      %c0_87 = arith.constant 0 : index
      %120 = vector.load %arg10[%c0_86, %c0_87] : memref<16x128xf32, #tpu.memory_space<vmem>>, vector<16x128xf32>
      %cst_88 = arith.constant 1.250000e-01 : f32
      %121 = vector.broadcast %cst_88 : f32 to vector<16x128xf32>
      %122 = arith.mulf %120, %121 : vector<16x128xf32>
      %c0_89 = arith.constant 0 : index
      %c0_90 = arith.constant 0 : index
      %123 = vector.load %arg7[%c0_89, %c0_90] : memref<16x128xf32, #tpu.memory_space<vmem>>, vector<16x128xf32>
      tpu.vector_store %arg7[%c0_89, %c0_90], %122 {strides = array<i32>} : memref<16x128xf32, #tpu.memory_space<vmem>>, vector<16x128xf32>,
    } else {
    }
    return
  }
  func.func @transform_0(%arg0: i32, %arg1: i32) -> (i32, i32, i32) {
    %c0_i32 = arith.constant 0 : i32
    %c0_i32_0 = arith.constant 0 : i32
    return %arg1, %arg0, %c0_i32 : i32, i32, i32
  }
  func.func @transform_1(%arg0: i32, %arg1: i32) -> (i32, i32) {
    %c0_i32 = arith.constant 0 : i32
    %c0_i32_0 = arith.constant 0 : i32
    %c0_i32_1 = arith.constant 0 : i32
    return %c0_i32, %c0_i32_0 : i32, i32
  }
  func.func @transform_2(%arg0: i32, %arg1: i32) -> (i32, i32) {
    %c0_i32 = arith.constant 0 : i32
    %c0_i32_0 = arith.constant 0 : i32
    %c0_i32_1 = arith.constant 0 : i32
    return %c0_i32, %c0_i32_0 : i32, i32
  }
  func.func @transform_3(%arg0: i32, %arg1: i32) -> (i32, i32) {
    %c0_i32 = arith.constant 0 : i32
    %c0_i32_0 = arith.constant 0 : i32
    %c0_i32_1 = arith.constant 0 : i32
    return %c0_i32, %c0_i32_0 : i32, i32
  }
  func.func @transform_4(%arg0: i32, %arg1: i32) -> (i32, i32) {
    %c0_i32 = arith.constant 0 : i32
    %c0_i32_0 = arith.constant 0 : i32
    %c0_i32_1 = arith.constant 0 : i32
    return %c0_i32, %c0_i32_0 : i32, i32
  }
  func.func @transform_5(%arg0: i32, %arg1: i32) -> (i32, i32) {
    %c0_i32 = arith.constant 0 : i32
    %c0_i32_0 = arith.constant 0 : i32
    return %arg0, %c0_i32 : i32, i32
  }
}

</mosaic_0001>

<llo_original>
// kernel: tpu_custom_call.1
$region0: #{tpu_custom_call.1}
  #allocation0 [shape = 'u32[]', space=smem, size = 0x4, offset = 0x4, fixed_abs, tag = 'smem constant byte address 0x4 - core index']
  #allocation1 [shape = 'u32[72,128]{1,0:T(1,128)}', space=vmem, size = 0x9000, scoped, tag = 'internal scratch']
  #allocation2 [shape = 'f32[8,16,128]{2,1,0:T(8,128)}', space=vmem, size = 0x10000, scoped, tag = 'scratch operand']
  #allocation3 [shape = 'f32[16,128]{1,0:T(8,128)}', space=vmem, size = 0x2000, scoped, tag = 'scratch operand']
  #allocation4 [shape = 'f32[16,128]{1,0:T(8,128)}', space=vmem, size = 0x2000, scoped, tag = 'scratch operand']
  %s0 = inlined_call_operand.hbm [shape: bf16[8,16,128], index: 0, kind: input, shape index: {}]
  %s1 = inlined_call_operand.hbm [shape: bf16[128,128], index: 1, kind: input, shape index: {}]
  %s2 = inlined_call_operand.hbm [shape: bf16[128,128], index: 2, kind: input, shape index: {}]
  %s3 = inlined_call_operand.vmem [shape: f32[1,128], index: 3, kind: input, shape index: {}]
  %s4 = inlined_call_operand.vmem [shape: f32[1,128], index: 4, kind: input, shape index: {}]
  %s5 = inlined_call_operand.hbm [shape: f32[16,128], index: 5, kind: output, shape index: {}]
  %s6 = sld [smem:[#allocation0]]
  $region50: #{tpu_custom_call.1} parent=0
    _
  %s8 = ssub.s32 1, %s6
  %s9 = scalar_select 0, %s8, %s6
  $region1: #{tpu_custom_call.1} parent=0
    #allocation5 [shape = 'u8[32768]{0}', space=vmem, size = 0x8000, scoped, tag = 'input window, operand 0, single buffered']
    #allocation6 [shape = 's32[1]{0}', space=sflag, size = 0x4, scoped, tag = 'scoped memory for tpu_custom_call.1']
    #allocation7 [shape = 's32[1]{0}', space=sflag, size = 0x4, scoped, tag = 'scoped memory for tpu_custom_call.1']
    #allocation8 [shape = 'u8[32768]{0}', space=vmem, size = 0x8000, scoped, tag = 'input window, operand 1, single buffered']
    #allocation9 [shape = 's32[1]{0}', space=sflag, size = 0x4, scoped, tag = 'scoped memory for tpu_custom_call.1']
    #allocation10 [shape = 'u8[32768]{0}', space=vmem, size = 0x8000, scoped, tag = 'input window, operand 2, single buffered']
    #allocation11 [shape = 'u8[8192]{0}', space=vmem, size = 0x2000, scoped, tag = 'output window, operand 0, single buffered']
    %10 = vsyncpa [#allocation6], 0
    %11 = vsyncpa [#allocation9], 0
    %12 = vsyncpa [#allocation7], 0
    // Predicated region
    $region2: #{tpu_custom_call.1} parent=1 // pred_check
      _
    $region3: #{tpu_custom_call.1} parent=1 // pred_check_branch
      %14 = sbr.rel (0) target = $region5
    $region4: #{tpu_custom_call.1} parent=1 // pred_region
      %16 = vsyncadd [#allocation6], 0
      %s17 = sshll.u32 %s0, 4
      %s18 = int_to_ptr.hbm [resolvable:$true] %s17
      %s19 = sshll.u32 [#allocation5], 4
      %s20 = int_to_ptr.vmem [resolvable:$true] %s19
      %25 = dma.hbm_to_vmem [thread:$0]  %s18, 1024, %s20, [#allocation6], 64, 64, 4
    $region5: #{tpu_custom_call.1} parent=1 // pred_fallthru
      _
    // Predicated region
    $region6: #{tpu_custom_call.1} parent=1 // pred_check
      _
    $region7: #{tpu_custom_call.1} parent=1 // pred_check_branch
      %27 = sbr.rel (0) target = $region9
    $region8: #{tpu_custom_call.1} parent=1 // pred_region
      %29 = vsyncadd [#allocation9], 0
      %s30 = sshll.u32 %s1, 4
      %s31 = int_to_ptr.hbm [resolvable:$true] %s30
      %s32 = sshll.u32 [#allocation8], 4
      %s33 = int_to_ptr.vmem [resolvable:$true] %s32
      %38 = dma.hbm_to_vmem [thread:$0]  %s31, 1024, %s33, [#allocation9], 64, 64, 4
    $region9: #{tpu_custom_call.1} parent=1 // pred_fallthru
      _
    // Predicated region
    $region10: #{tpu_custom_call.1} parent=1 // pred_check
      _
    $region11: #{tpu_custom_call.1} parent=1 // pred_check_branch
      %40 = sbr.rel (0) target = $region13
    $region12: #{tpu_custom_call.1} parent=1 // pred_region
      %42 = vsyncadd [#allocation9], 0
      %s43 = sshll.u32 %s2, 4
      %s44 = int_to_ptr.hbm [resolvable:$true] %s43
      %s45 = sshll.u32 [#allocation10], 4
      %s46 = int_to_ptr.vmem [resolvable:$true] %s45
      %51 = dma.hbm_to_vmem [thread:$0]  %s44, 1024, %s46, [#allocation9], 64, 64, 4
    $region13: #{tpu_custom_call.1} parent=1 // pred_fallthru
      _
    // Predicated region
    $region14: #{tpu_custom_call.1} parent=1 // pred_check
      _
    $region15: #{tpu_custom_call.1} parent=1 // pred_check_branch
      %53 = sbr.rel (0) target = $region17
    $region16: #{tpu_custom_call.1} parent=1 // pred_region
      _
    $region17: #{tpu_custom_call.1} parent=1 // pred_fallthru
      _
    // Predicated region
    $region18: #{tpu_custom_call.1} parent=1 // pred_check
      _
    $region19: #{tpu_custom_call.1} parent=1 // pred_check_branch
      %55 = sbr.rel (0) target = $region21
    $region20: #{tpu_custom_call.1} parent=1 // pred_region
      _
    $region21: #{tpu_custom_call.1} parent=1 // pred_fallthru
      _
    // Predicated region
    $region22: #{tpu_custom_call.1} parent=1 // pred_check
      _
    $region23: #{tpu_custom_call.1} parent=1 // pred_check_branch
      %57 = sbr.rel (0) target = $region25
    $region24: #{tpu_custom_call.1} parent=1 // pred_region
      %59 = dma.done [#allocation6], 1024
    $region25: #{tpu_custom_call.1} parent=1 // pred_fallthru
      _
    // Predicated region
    $region26: #{tpu_custom_call.1} parent=1 // pred_check
      _
    $region27: #{tpu_custom_call.1} parent=1 // pred_check_branch
      %61 = sbr.rel (0) target = $region29
    $region28: #{tpu_custom_call.1} parent=1 // pred_region
      %63 = dma.done [#allocation9], 1024
    $region29: #{tpu_custom_call.1} parent=1 // pred_fallthru
      _
    // Predicated region
    $region30: #{tpu_custom_call.1} parent=1 // pred_check
      _
    $region31: #{tpu_custom_call.1} parent=1 // pred_check_branch
      %65 = sbr.rel (0) target = $region33
    $region32: #{tpu_custom_call.1} parent=1 // pred_region
      %67 = dma.done [#allocation9], 1024
    $region33: #{tpu_custom_call.1} parent=1 // pred_fallthru
      _
    %v68 = vld [vmem:[#allocation5] sm:$0xf]
    %v69 = vld [vmem:[#allocation5 + $0x4] sm:$0xf]
    %v70 = vld [vmem:[#allocation5 + $0x8] sm:$0xf]
    %v71 = vld [vmem:[#allocation5 + $0xc] sm:$0xf]
    %v72 = vld [vmem:[#allocation5 + $0x10] sm:$0xf]
    %v73 = vld [vmem:[#allocation5 + $0x14] sm:$0xf]
    %v74 = vld [vmem:[#allocation5 + $0x18] sm:$0xf]
    %v75 = vld [vmem:[#allocation5 + $0x1c] sm:$0xf]
    %v76 = vld [vmem:[#allocation5 + $0x20] sm:$0xf]
    %v77 = vld [vmem:[#allocation5 + $0x24] sm:$0xf]
    %v78 = vld [vmem:[#allocation5 + $0x28] sm:$0xf]
    %v79 = vld [vmem:[#allocation5 + $0x2c] sm:$0xf]
    %v80 = vld [vmem:[#allocation5 + $0x30] sm:$0xf]
    %v81 = vld [vmem:[#allocation5 + $0x34] sm:$0xf]
    %v82 = vld [vmem:[#allocation5 + $0x38] sm:$0xf]
    %v83 = vld [vmem:[#allocation5 + $0x3c] sm:$0xf]
    %v84 = vld [vmem:[#allocation8] sm:$0xf]
    %v85 = vld [vmem:[#allocation8 + $0x4] sm:$0xf]
    %v86 = vld [vmem:[#allocation8 + $0x8] sm:$0xf]
    %v87 = vld [vmem:[#allocation8 + $0xc] sm:$0xf]
    %v88 = vld [vmem:[#allocation8 + $0x10] sm:$0xf]
    %v89 = vld [vmem:[#allocation8 + $0x14] sm:$0xf]
    %v90 = vld [vmem:[#allocation8 + $0x18] sm:$0xf]
    %v91 = vld [vmem:[#allocation8 + $0x1c] sm:$0xf]
    %v92 = vld [vmem:[#allocation8 + $0x20] sm:$0xf]
    %v93 = vld [vmem:[#allocation8 + $0x24] sm:$0xf]
    %v94 = vld [vmem:[#allocation8 + $0x28] sm:$0xf]
    %v95 = vld [vmem:[#allocation8 + $0x2c] sm:$0xf]
    %v96 = vld [vmem:[#allocation8 + $0x30] sm:$0xf]
    %v97 = vld [vmem:[#allocation8 + $0x34] sm:$0xf]
    %v98 = vld [vmem:[#allocation8 + $0x38] sm:$0xf]
    %v99 = vld [vmem:[#allocation8 + $0x3c] sm:$0xf]
    %v100 = vld [vmem:[%s3] sm:$0x1]
    %v102 = vperm.slane %v100, 0
    %v120 = vunpack.c.l.b16 %v68
    %v121 = vunpack.c.l.b16 %v69
    %v122 = vunpack.c.l.b16 %v70
    %v123 = vunpack.c.l.b16 %v71
    %v124 = vunpack.c.l.b16 %v72
    %v125 = vunpack.c.l.b16 %v73
    %v126 = vunpack.c.l.b16 %v74
    %v127 = vunpack.c.l.b16 %v75
    %v128 = vunpack.c.l.b16 %v76
    %v129 = vunpack.c.l.b16 %v77
    %v130 = vunpack.c.l.b16 %v78
    %v131 = vunpack.c.l.b16 %v79
    %v132 = vunpack.c.l.b16 %v80
    %v133 = vunpack.c.l.b16 %v81
    %v134 = vunpack.c.l.b16 %v82
    %v135 = vunpack.c.l.b16 %v83
    %v136 = vpack.c.b16 %v121, %v120
    %v137 = vpack.c.b16 %v123, %v122
    %v138 = vpack.c.b16 %v125, %v124
    %v139 = vpack.c.b16 %v127, %v126
    %v140 = vpack.c.b16 %v129, %v128
    %v141 = vpack.c.b16 %v131, %v130
    %v142 = vpack.c.b16 %v133, %v132
    %v143 = vpack.c.b16 %v135, %v134
    %v168 = vunpack.c.l.b16 %v84
    %v169 = vunpack.c.l.b16 %v85
    %v170 = vunpack.c.l.b16 %v86
    %v171 = vunpack.c.l.b16 %v87
    %v172 = vunpack.c.l.b16 %v88
    %v173 = vunpack.c.l.b16 %v89
    %v174 = vunpack.c.l.b16 %v90
    %v175 = vunpack.c.l.b16 %v91
    %v176 = vunpack.c.l.b16 %v92
    %v177 = vunpack.c.l.b16 %v93
    %v178 = vunpack.c.l.b16 %v94
    %v179 = vunpack.c.l.b16 %v95
    %v180 = vunpack.c.l.b16 %v96
    %v181 = vunpack.c.l.b16 %v97
    %v182 = vunpack.c.l.b16 %v98
    %v183 = vunpack.c.l.b16 %v99
    %v184 = vpack.c.b16 %v169, %v168
    %v185 = vpack.c.b16 %v171, %v170
    %v186 = vpack.c.b16 %v173, %v172
    %v187 = vpack.c.b16 %v175, %v174
    %v188 = vpack.c.b16 %v177, %v176
    %v189 = vpack.c.b16 %v179, %v178
    %v190 = vpack.c.b16 %v181, %v180
    %v191 = vpack.c.b16 %v183, %v182
    %200 = vmatpush.bf16.msra.mxu0 %v191
    %201 = vmatpush.bf16.msra.mxu0 %v190
    %202 = vmatpush.bf16.msra.mxu0 %v189
    %203 = vmatpush.bf16.msra.mxu0 %v188
    %204 = vmatpush.bf16.msra.mxu0 %v187
    %205 = vmatpush.bf16.msra.mxu0 %v186
    %206 = vmatpush.bf16.msra.mxu0 %v185
    %207 = vmatpush.bf16.msra.mxu0 %v184
    %208 = vmatmul.bf16.gmra.mxu0 %v136
    %v209 = vpop.f32.mrf.mxu0
    %v210 = vadd.f32 %v102, %v209
    %v211 = vpop.f32.mrf.mxu0
    %v212 = vadd.f32 %v102, %v211
    %213 = vmatmul.bf16.gmra.mxu0 %v137
    %v214 = vpop.f32.mrf.mxu0
    %v215 = vadd.f32 %v102, %v214
    %v216 = vpop.f32.mrf.mxu0
    %v217 = vadd.f32 %v102, %v216
    %218 = vmatmul.bf16.gmra.mxu0 %v138
    %v219 = vpop.f32.mrf.mxu0
    %v220 = vadd.f32 %v102, %v219
    %v221 = vpop.f32.mrf.mxu0
    %v222 = vadd.f32 %v102, %v221
    %223 = vmatmul.bf16.gmra.mxu0 %v139
    %v224 = vpop.f32.mrf.mxu0
    %v225 = vadd.f32 %v102, %v224
    %v226 = vpop.f32.mrf.mxu0
    %v227 = vadd.f32 %v102, %v226
    %228 = vmatmul.bf16.gmra.mxu0 %v140
    %v229 = vpop.f32.mrf.mxu0
    %v230 = vadd.f32 %v102, %v229
    %v231 = vpop.f32.mrf.mxu0
    %v232 = vadd.f32 %v102, %v231
    %233 = vmatmul.bf16.gmra.mxu0 %v141
    %v234 = vpop.f32.mrf.mxu0
    %v235 = vadd.f32 %v102, %v234
    %v236 = vpop.f32.mrf.mxu0
    %v237 = vadd.f32 %v102, %v236
    %238 = vmatmul.bf16.gmra.mxu0 %v142
    %v239 = vpop.f32.mrf.mxu0
    %v240 = vadd.f32 %v102, %v239
    %v241 = vpop.f32.mrf.mxu0
    %v242 = vadd.f32 %v102, %v241
    %243 = vmatmul.bf16.gmra.mxu0 %v143
    %v244 = vpop.f32.mrf.mxu0
    %v245 = vadd.f32 %v102, %v244
    %v246 = vpop.f32.mrf.mxu0
    %v247 = vadd.f32 %v102, %v246
    %248 = vdwg.mxu0
    %249 = vst [vmem:[#allocation2] sm:$0xff] %v210
    %250 = vst [vmem:[#allocation2 + $0x8] sm:$0xff] %v212
    %251 = vst [vmem:[#allocation2 + $0x10] sm:$0xff] %v215
    %252 = vst [vmem:[#allocation2 + $0x18] sm:$0xff] %v217
    %253 = vst [vmem:[#allocation2 + $0x20] sm:$0xff] %v220
    %254 = vst [vmem:[#allocation2 + $0x28] sm:$0xff] %v222
    %255 = vst [vmem:[#allocation2 + $0x30] sm:$0xff] %v225
    %256 = vst [vmem:[#allocation2 + $0x38] sm:$0xff] %v227
    %257 = vst [vmem:[#allocation2 + $0x40] sm:$0xff] %v230
    %258 = vst [vmem:[#allocation2 + $0x48] sm:$0xff] %v232
    %259 = vst [vmem:[#allocation2 + $0x50] sm:$0xff] %v235
    %260 = vst [vmem:[#allocation2 + $0x58] sm:$0xff] %v237
    %261 = vst [vmem:[#allocation2 + $0x60] sm:$0xff] %v240
    %262 = vst [vmem:[#allocation2 + $0x68] sm:$0xff] %v242
    %263 = vst [vmem:[#allocation2 + $0x70] sm:$0xff] %v245
    %264 = vst [vmem:[#allocation2 + $0x78] sm:$0xff] %v247
    %p265 = scmp.eq.s32.totalorder 0, 0
    // Predicated region
    $region34: #{tpu_custom_call.1} parent=1 // pred_check
      %p266 = pneg %p265
    $region35: #{tpu_custom_call.1} parent=1 // pred_check_branch
      %268 = sbr.rel (%p266) target = $region37
    $region36: #{tpu_custom_call.1} parent=1 // pred_region
      %269 = vst [vmem:[#allocation3] sm:$0xff] 0.0
      %270 = vst [vmem:[#allocation3 + $0x8] sm:$0xff] 0.0
      %271 = vst [vmem:[#allocation4] sm:$0xff] 0.0
      %272 = vst [vmem:[#allocation4 + $0x8] sm:$0xff] 0.0
    $region37: #{tpu_custom_call.1} parent=1 // pred_fallthru
      _
    %v273 = vld [vmem:[#allocation10] sm:$0xf]
    %v274 = vld [vmem:[#allocation10 + $0x4] sm:$0xf]
    %v275 = vld [vmem:[#allocation10 + $0x8] sm:$0xf]
    %v276 = vld [vmem:[#allocation10 + $0xc] sm:$0xf]
    %v277 = vld [vmem:[#allocation10 + $0x10] sm:$0xf]
    %v278 = vld [vmem:[#allocation10 + $0x14] sm:$0xf]
    %v279 = vld [vmem:[#allocation10 + $0x18] sm:$0xf]
    %v280 = vld [vmem:[#allocation10 + $0x1c] sm:$0xf]
    %v281 = vld [vmem:[#allocation10 + $0x20] sm:$0xf]
    %v282 = vld [vmem:[#allocation10 + $0x24] sm:$0xf]
    %v283 = vld [vmem:[#allocation10 + $0x28] sm:$0xf]
    %v284 = vld [vmem:[#allocation10 + $0x2c] sm:$0xf]
    %v285 = vld [vmem:[#allocation10 + $0x30] sm:$0xf]
    %v286 = vld [vmem:[#allocation10 + $0x34] sm:$0xf]
    %v287 = vld [vmem:[#allocation10 + $0x38] sm:$0xf]
    %v288 = vld [vmem:[#allocation10 + $0x3c] sm:$0xf]
    %v289 = vld [vmem:[%s4] sm:$0x1]
    %p290 = scmp.gt.s32.totalorder 0, 0
    %s291 = scalar_select %p290, 1, 0
    %s292 = scvt.s32.f32 %s291
    %v293 = vstv %s292
    %v294 = vmul.f32 %v293, %v289
    %v295 = vld [vmem:[#allocation3] sm:$0xff]
    %v296 = vld [vmem:[#allocation3 + $0x8] sm:$0xff]
    %v297 = vld [vmem:[#allocation2] sm:$0xff]
    %v298 = vld [vmem:[#allocation2 + $0x8] sm:$0xff]
    %v299 = vpack.c.bf16 %v296, %v295
    %v316 = vunpack.c.l.b16 %v273
    %v317 = vunpack.c.l.b16 %v274
    %v318 = vunpack.c.l.b16 %v275
    %v319 = vunpack.c.l.b16 %v276
    %v320 = vunpack.c.l.b16 %v277
    %v321 = vunpack.c.l.b16 %v278
    %v322 = vunpack.c.l.b16 %v279
    %v323 = vunpack.c.l.b16 %v280
    %v324 = vunpack.c.l.b16 %v281
    %v325 = vunpack.c.l.b16 %v282
    %v326 = vunpack.c.l.b16 %v283
    %v327 = vunpack.c.l.b16 %v284
    %v328 = vunpack.c.l.b16 %v285
    %v329 = vunpack.c.l.b16 %v286
    %v330 = vunpack.c.l.b16 %v287
    %v331 = vunpack.c.l.b16 %v288
    %v332 = vpack.c.b16 %v317, %v316
    %v333 = vpack.c.b16 %v319, %v318
    %v334 = vpack.c.b16 %v321, %v320
    %v335 = vpack.c.b16 %v323, %v322
    %v336 = vpack.c.b16 %v325, %v324
    %v337 = vpack.c.b16 %v327, %v326
    %v338 = vpack.c.b16 %v329, %v328
    %v339 = vpack.c.b16 %v331, %v330
    %348 = vmatpush.bf16.msra.mxu0 %v339
    %349 = vmatpush.bf16.msra.mxu0 %v338
    %350 = vmatpush.bf16.msra.mxu0 %v337
    %351 = vmatpush.bf16.msra.mxu0 %v336
    %352 = vmatpush.bf16.msra.mxu0 %v335
    %353 = vmatpush.bf16.msra.mxu0 %v334
    %354 = vmatpush.bf16.msra.mxu0 %v333
    %355 = vmatpush.bf16.msra.mxu0 %v332
    %356 = vmatmul.bf16.gmra.mxu0 %v299
    %v357 = vpop.f32.mrf.mxu0
    %v358 = vadd.f32 0.0, %v357
    %v359 = vpop.f32.mrf.mxu0
    %v360 = vadd.f32 0.0, %v359
    %361 = vdwg.mxu0
    %v362 = vadd.f32 %v297, %v358
    %v363 = vadd.f32 %v298, %v360
    %v365 = vperm.slane %v294, 0
    %v367 = vadd.f32 %v362, %v365
    %v368 = vadd.f32 %v363, %v365
    %v369 = vmax.f32 %v367, 0.0
    %v370 = vmax.f32 %v368, 0.0
    %v371 = vld [vmem:[#allocation4] sm:$0xff]
    %v372 = vld [vmem:[#allocation4 + $0x8] sm:$0xff]
    %v373 = vadd.f32 %v371, %v369
    %v374 = vadd.f32 %v372, %v370
    %375 = vst [vmem:[#allocation4] sm:$0xff] %v373
    %376 = vst [vmem:[#allocation4 + $0x8] sm:$0xff] %v374
    %s377 = scalar_lea.vmem [#allocation2], 16
    %v378 = vld [vmem:[%s377] sm:$0xff]
    %v379 = vld [vmem:[%s377 + $0x8] sm:$0xff]
    %v380 = vpack.c.bf16 %v370, %v369
    %381 = vmatpush.bf16.msra.mxu0 %v339
    %382 = vmatpush.bf16.msra.mxu0 %v338
    %383 = vmatpush.bf16.msra.mxu0 %v337
    %384 = vmatpush.bf16.msra.mxu0 %v336
    %385 = vmatpush.bf16.msra.mxu0 %v335
    %386 = vmatpush.bf16.msra.mxu0 %v334
    %387 = vmatpush.bf16.msra.mxu0 %v333
    %388 = vmatpush.bf16.msra.mxu0 %v332
    %389 = vmatmul.bf16.gmra.mxu0 %v380
    %v390 = vpop.f32.mrf.mxu0
    %v391 = vadd.f32 0.0, %v390
    %v392 = vpop.f32.mrf.mxu0
    %v393 = vadd.f32 0.0, %v392
    %394 = vdwg.mxu0
    %v395 = vadd.f32 %v378, %v391
    %v396 = vadd.f32 %v379, %v393
    %v398 = vperm.slane %v289, 0
    %v400 = vadd.f32 %v395, %v398
    %v401 = vadd.f32 %v396, %v398
    %v402 = vmax.f32 %v400, 0.0
    %v403 = vmax.f32 %v401, 0.0
    %v404 = vld [vmem:[#allocation4] sm:$0xff]
    %v405 = vld [vmem:[#allocation4 + $0x8] sm:$0xff]
    %v406 = vadd.f32 %v404, %v402
    %v407 = vadd.f32 %v405, %v403
    %408 = vst [vmem:[#allocation4] sm:$0xff] %v406
    %409 = vst [vmem:[#allocation4 + $0x8] sm:$0xff] %v407
    %s410 = scalar_lea.vmem [#allocation2], 32
    %v411 = vld [vmem:[%s410] sm:$0xff]
    %v412 = vld [vmem:[%s410 + $0x8] sm:$0xff]
    %v413 = vpack.c.bf16 %v403, %v402
    %414 = vmatpush.bf16.msra.mxu0 %v339
    %415 = vmatpush.bf16.msra.mxu0 %v338
    %416 = vmatpush.bf16.msra.mxu0 %v337
    %417 = vmatpush.bf16.msra.mxu0 %v336
    %418 = vmatpush.bf16.msra.mxu0 %v335
    %419 = vmatpush.bf16.msra.mxu0 %v334
    %420 = vmatpush.bf16.msra.mxu0 %v333
    %421 = vmatpush.bf16.msra.mxu0 %v332
    %422 = vmatmul.bf16.gmra.mxu0 %v413
    %v423 = vpop.f32.mrf.mxu0
    %v424 = vadd.f32 0.0, %v423
    %v425 = vpop.f32.mrf.mxu0
    %v426 = vadd.f32 0.0, %v425
    %427 = vdwg.mxu0
    %v428 = vadd.f32 %v411, %v424
    %v429 = vadd.f32 %v412, %v426
    %v430 = vadd.f32 %v428, %v398
    %v431 = vadd.f32 %v429, %v398
    %v432 = vmax.f32 %v430, 0.0
    %v433 = vmax.f32 %v431, 0.0
    %v434 = vld [vmem:[#allocation4] sm:$0xff]
    %v435 = vld [vmem:[#allocation4 + $0x8] sm:$0xff]
    %v436 = vadd.f32 %v434, %v432
    %v437 = vadd.f32 %v435, %v433
    %438 = vst [vmem:[#allocation4] sm:$0xff] %v436
    %439 = vst [vmem:[#allocation4 + $0x8] sm:$0xff] %v437
    %s440 = scalar_lea.vmem [#allocation2], 48
    %v441 = vld [vmem:[%s440] sm:$0xff]
    %v442 = vld [vmem:[%s440 + $0x8] sm:$0xff]
    %v443 = vpack.c.bf16 %v433, %v432
    %444 = vmatpush.bf16.msra.mxu0 %v339
    %445 = vmatpush.bf16.msra.mxu0 %v338
    %446 = vmatpush.bf16.msra.mxu0 %v337
    %447 = vmatpush.bf16.msra.mxu0 %v336
    %448 = vmatpush.bf16.msra.mxu0 %v335
    %449 = vmatpush.bf16.msra.mxu0 %v334
    %450 = vmatpush.bf16.msra.mxu0 %v333
    %451 = vmatpush.bf16.msra.mxu0 %v332
    %452 = vmatmul.bf16.gmra.mxu0 %v443
    %v453 = vpop.f32.mrf.mxu0
    %v454 = vadd.f32 0.0, %v453
    %v455 = vpop.f32.mrf.mxu0
    %v456 = vadd.f32 0.0, %v455
    %457 = vdwg.mxu0
    %v458 = vadd.f32 %v441, %v454
    %v459 = vadd.f32 %v442, %v456
    %v460 = vadd.f32 %v458, %v398
    %v461 = vadd.f32 %v459, %v398
    %v462 = vmax.f32 %v460, 0.0
    %v463 = vmax.f32 %v461, 0.0
    %v464 = vld [vmem:[#allocation4] sm:$0xff]
    %v465 = vld [vmem:[#allocation4 + $0x8] sm:$0xff]
    %v466 = vadd.f32 %v464, %v462
    %v467 = vadd.f32 %v465, %v463
    %468 = vst [vmem:[#allocation4] sm:$0xff] %v466
    %469 = vst [vmem:[#allocation4 + $0x8] sm:$0xff] %v467
    %s470 = scalar_lea.vmem [#allocation2], 64
    %v471 = vld [vmem:[%s470] sm:$0xff]
    %v472 = vld [vmem:[%s470 + $0x8] sm:$0xff]
    %v473 = vpack.c.bf16 %v463, %v462
    %474 = vmatpush.bf16.msra.mxu0 %v339
    %475 = vmatpush.bf16.msra.mxu0 %v338
    %476 = vmatpush.bf16.msra.mxu0 %v337
    %477 = vmatpush.bf16.msra.mxu0 %v336
    %478 = vmatpush.bf16.msra.mxu0 %v335
    %479 = vmatpush.bf16.msra.mxu0 %v334
    %480 = vmatpush.bf16.msra.mxu0 %v333
    %481 = vmatpush.bf16.msra.mxu0 %v332
    %482 = vmatmul.bf16.gmra.mxu0 %v473
    %v483 = vpop.f32.mrf.mxu0
    %v484 = vadd.f32 0.0, %v483
    %v485 = vpop.f32.mrf.mxu0
    %v486 = vadd.f32 0.0, %v485
    %487 = vdwg.mxu0
    %v488 = vadd.f32 %v471, %v484
    %v489 = vadd.f32 %v472, %v486
    %v490 = vadd.f32 %v488, %v398
    %v491 = vadd.f32 %v489, %v398
    %v492 = vmax.f32 %v490, 0.0
    %v493 = vmax.f32 %v491, 0.0
    %v494 = vld [vmem:[#allocation4] sm:$0xff]
    %v495 = vld [vmem:[#allocation4 + $0x8] sm:$0xff]
    %v496 = vadd.f32 %v494, %v492
    %v497 = vadd.f32 %v495, %v493
    %498 = vst [vmem:[#allocation4] sm:$0xff] %v496
    %499 = vst [vmem:[#allocation4 + $0x8] sm:$0xff] %v497
    %s500 = scalar_lea.vmem [#allocation2], 80
    %v501 = vld [vmem:[%s500] sm:$0xff]
    %v502 = vld [vmem:[%s500 + $0x8] sm:$0xff]
    %v503 = vpack.c.bf16 %v493, %v492
    %504 = vmatpush.bf16.msra.mxu0 %v339
    %505 = vmatpush.bf16.msra.mxu0 %v338
    %506 = vmatpush.bf16.msra.mxu0 %v337
    %507 = vmatpush.bf16.msra.mxu0 %v336
    %508 = vmatpush.bf16.msra.mxu0 %v335
    %509 = vmatpush.bf16.msra.mxu0 %v334
    %510 = vmatpush.bf16.msra.mxu0 %v333
    %511 = vmatpush.bf16.msra.mxu0 %v332
    %512 = vmatmul.bf16.gmra.mxu0 %v503
    %v513 = vpop.f32.mrf.mxu0
    %v514 = vadd.f32 0.0, %v513
    %v515 = vpop.f32.mrf.mxu0
    %v516 = vadd.f32 0.0, %v515
    %517 = vdwg.mxu0
    %v518 = vadd.f32 %v501, %v514
    %v519 = vadd.f32 %v502, %v516
    %v520 = vadd.f32 %v518, %v398
    %v521 = vadd.f32 %v519, %v398
    %v522 = vmax.f32 %v520, 0.0
    %v523 = vmax.f32 %v521, 0.0
    %v524 = vld [vmem:[#allocation4] sm:$0xff]
    %v525 = vld [vmem:[#allocation4 + $0x8] sm:$0xff]
    %v526 = vadd.f32 %v524, %v522
    %v527 = vadd.f32 %v525, %v523
    %528 = vst [vmem:[#allocation4] sm:$0xff] %v526
    %529 = vst [vmem:[#allocation4 + $0x8] sm:$0xff] %v527
    %s530 = scalar_lea.vmem [#allocation2], 96
    %v531 = vld [vmem:[%s530] sm:$0xff]
    %v532 = vld [vmem:[%s530 + $0x8] sm:$0xff]
    %v533 = vpack.c.bf16 %v523, %v522
    %534 = vmatpush.bf16.msra.mxu0 %v339
    %535 = vmatpush.bf16.msra.mxu0 %v338
    %536 = vmatpush.bf16.msra.mxu0 %v337
    %537 = vmatpush.bf16.msra.mxu0 %v336
    %538 = vmatpush.bf16.msra.mxu0 %v335
    %539 = vmatpush.bf16.msra.mxu0 %v334
    %540 = vmatpush.bf16.msra.mxu0 %v333
    %541 = vmatpush.bf16.msra.mxu0 %v332
    %542 = vmatmul.bf16.gmra.mxu0 %v533
    %v543 = vpop.f32.mrf.mxu0
    %v544 = vadd.f32 0.0, %v543
    %v545 = vpop.f32.mrf.mxu0
    %v546 = vadd.f32 0.0, %v545
    %547 = vdwg.mxu0
    %v548 = vadd.f32 %v531, %v544
    %v549 = vadd.f32 %v532, %v546
    %v550 = vadd.f32 %v548, %v398
    %v551 = vadd.f32 %v549, %v398
    %v552 = vmax.f32 %v550, 0.0
    %v553 = vmax.f32 %v551, 0.0
    %v554 = vld [vmem:[#allocation4] sm:$0xff]
    %v555 = vld [vmem:[#allocation4 + $0x8] sm:$0xff]
    %v556 = vadd.f32 %v554, %v552
    %v557 = vadd.f32 %v555, %v553
    %558 = vst [vmem:[#allocation4] sm:$0xff] %v556
    %559 = vst [vmem:[#allocation4 + $0x8] sm:$0xff] %v557
    %s560 = scalar_lea.vmem [#allocation2], 112
    %v561 = vld [vmem:[%s560] sm:$0xff]
    %v562 = vld [vmem:[%s560 + $0x8] sm:$0xff]
    %v563 = vpack.c.bf16 %v553, %v552
    %564 = vmatpush.bf16.msra.mxu0 %v339
    %565 = vmatpush.bf16.msra.mxu0 %v338
    %566 = vmatpush.bf16.msra.mxu0 %v337
    %567 = vmatpush.bf16.msra.mxu0 %v336
    %568 = vmatpush.bf16.msra.mxu0 %v335
    %569 = vmatpush.bf16.msra.mxu0 %v334
    %570 = vmatpush.bf16.msra.mxu0 %v333
    %571 = vmatpush.bf16.msra.mxu0 %v332
    %572 = vmatmul.bf16.gmra.mxu0 %v563
    %v573 = vpop.f32.mrf.mxu0
    %v574 = vadd.f32 0.0, %v573
    %v575 = vpop.f32.mrf.mxu0
    %v576 = vadd.f32 0.0, %v575
    %577 = vdwg.mxu0
    %v578 = vadd.f32 %v561, %v574
    %v579 = vadd.f32 %v562, %v576
    %v580 = vadd.f32 %v578, %v398
    %v581 = vadd.f32 %v579, %v398
    %v582 = vmax.f32 %v580, 0.0
    %v583 = vmax.f32 %v581, 0.0
    %v584 = vld [vmem:[#allocation4] sm:$0xff]
    %v585 = vld [vmem:[#allocation4 + $0x8] sm:$0xff]
    %v586 = vadd.f32 %v584, %v582
    %v587 = vadd.f32 %v585, %v583
    %588 = vst [vmem:[#allocation4] sm:$0xff] %v586
    %589 = vst [vmem:[#allocation4 + $0x8] sm:$0xff] %v587
    %590 = vst [vmem:[#allocation3] sm:$0xff] %v582
    %591 = vst [vmem:[#allocation3 + $0x8] sm:$0xff] %v583
    // Predicated region
    $region38: #{tpu_custom_call.1} parent=1 // pred_check
      %p592 = pneg %p265
    $region39: #{tpu_custom_call.1} parent=1 // pred_check_branch
      %594 = sbr.rel (%p592) target = $region41
    $region40: #{tpu_custom_call.1} parent=1 // pred_region
      %v595 = vld [vmem:[#allocation4] sm:$0xff]
      %v596 = vld [vmem:[#allocation4 + $0x8] sm:$0xff]
      %v597 = vmul.f32 %v595, 0.125
      %v598 = vmul.f32 %v596, 0.125
      %599 = vst [vmem:[#allocation11] sm:$0xff] %v597
      %600 = vst [vmem:[#allocation11 + $0x8] sm:$0xff] %v598
    $region41: #{tpu_custom_call.1} parent=1 // pred_fallthru
      _
    // Predicated region
    $region42: #{tpu_custom_call.1} parent=1 // pred_check
      _
    $region43: #{tpu_custom_call.1} parent=1 // pred_check_branch
      %602 = sbr.rel (0) target = $region45
    $region44: #{tpu_custom_call.1} parent=1 // pred_region
      %604 = vsyncadd [#allocation7], 0
      %s605 = sshll.u32 [#allocation11], 4
      %s606 = int_to_ptr.vmem [resolvable:$true] %s605
      %s607 = sshll.u32 %s5, 4
      %s608 = int_to_ptr.hbm [resolvable:$true] %s607
      %613 = dma.vmem_to_hbm [thread:$0]  %s606, 256, %s608, [#allocation7], 128, 128, 8
    $region45: #{tpu_custom_call.1} parent=1 // pred_fallthru
      _
    // Predicated region
    $region46: #{tpu_custom_call.1} parent=1 // pred_check
      _
    $region47: #{tpu_custom_call.1} parent=1 // pred_check_branch
      %615 = sbr.rel (0) target = $region49
    $region48: #{tpu_custom_call.1} parent=1 // pred_region
      %617 = dma.done [#allocation7], 256
    $region49: #{tpu_custom_call.1} parent=1 // pred_fallthru
      _
    %618 = vsyncpa [#allocation6], 1
    %619 = vsyncpa [#allocation9], 1
    %620 = vsyncpa [#allocation7], 1

// kernel: tpu_custom_call.1
$region0: #{tpu_custom_call.1}
  #allocation0 [shape = 'u32[]', space=smem, size = 0x4, offset = 0x4, fixed_abs, tag = 'smem constant byte address 0x4 - core index']
  #allocation1 [shape = 'u32[72,128]{1,0:T(1,128)}', space=vmem, size = 0x9000, scoped, tag = 'internal scratch']
  #allocation2 [shape = 'f32[8,16,128]{2,1,0:T(8,128)}', space=vmem, size = 0x10000, scoped, tag = 'scratch operand']
  #allocation3 [shape = 'f32[16,128]{1,0:T(8,128)}', space=vmem, size = 0x2000, scoped, tag = 'scratch operand']
  #allocation4 [shape = 'f32[16,128]{1,0:T(8,128)}', space=vmem, size = 0x2000, scoped, tag = 'scratch operand']
  %s0 = inlined_call_operand.hbm [shape: bf16[8,16,128], index: 0, kind: input, shape index: {}]
  %s1 = inlined_call_operand.hbm [shape: bf16[128,128], index: 1, kind: input, shape index: {}]
  %s2 = inlined_call_operand.hbm [shape: bf16[128,128], index: 2, kind: input, shape index: {}]
  %s3 = inlined_call_operand.vmem [shape: f32[1,128], index: 3, kind: input, shape index: {}]
  %s4 = inlined_call_operand.vmem [shape: f32[1,128], index: 4, kind: input, shape index: {}]
  %s5 = inlined_call_operand.hbm [shape: f32[16,128], index: 5, kind: output, shape index: {}]
  %s6 = sld [smem:[#allocation0]]
  $region50: #{tpu_custom_call.1} parent=0
    _
  %s8 = ssub.s32 1, %s6
  %s9 = scalar_select 0, %s8, %s6
  $region1: #{tpu_custom_call.1} parent=0
    #allocation5 [shape = 'u8[32768]{0}', space=vmem, size = 0x8000, scoped, tag = 'input window, operand 0, single buffered']
    #allocation6 [shape = 's32[1]{0}', space=sflag, size = 0x4, scoped, tag = 'scoped memory for tpu_custom_call.1']
    #allocation7 [shape = 's32[1]{0}', space=sflag, size = 0x4, scoped, tag = 'scoped memory for tpu_custom_call.1']
    #allocation8 [shape = 'u8[32768]{0}', space=vmem, size = 0x8000, scoped, tag = 'input window, operand 1, single buffered']
    #allocation9 [shape = 's32[1]{0}', space=sflag, size = 0x4, scoped, tag = 'scoped memory for tpu_custom_call.1']
    #allocation10 [shape = 'u8[32768]{0}', space=vmem, size = 0x8000, scoped, tag = 'input window, operand 2, single buffered']
    #allocation11 [shape = 'u8[8192]{0}', space=vmem, size = 0x2000, scoped, tag = 'output window, operand 0, single buffered']
    %10 = vsyncpa [#allocation6], 0
    %11 = vsyncpa [#allocation9], 0
    %12 = vsyncpa [#allocation7], 0
    // Predicated region
    $region2: #{tpu_custom_call.1} parent=1 // pred_check
      _
    $region3: #{tpu_custom_call.1} parent=1 // pred_check_branch
      %14 = sbr.rel (0) target = $region5
    $region4: #{tpu_custom_call.1} parent=1 // pred_region
      %16 = vsyncadd [#allocation6], 0
      %s17 = sshll.u32 %s0, 4
      %s18 = int_to_ptr.hbm [resolvable:$true] %s17
      %s19 = sshll.u32 [#allocation5], 4
      %s20 = int_to_ptr.vmem [resolvable:$true] %s19
      %25 = dma.hbm_to_vmem [thread:$0]  %s18, 1024, %s20, [#allocation6], 64, 64, 4
    $region5: #{tpu_custom_call.1} parent=1 // pred_fallthru
      _
    // Predicated region
    $region6: #{tpu_custom_call.1} parent=1 // pred_check
      _
    $region7: #{tpu_custom_call.1} parent=1 // pred_check_branch
      %27 = sbr.rel (0) target = $region9
    $region8: #{tpu_custom_call.1} parent=1 // pred_region
      %29 = vsyncadd [#allocation9], 0
      %s30 = sshll.u32 %s1, 4
      %s31 = int_to_ptr.hbm [resolvable:$true] %s30
      %s32 = sshll.u32 [#allocation8], 4
      %s33 = int_to_ptr.vmem [resolvable:$true] %s32
      %38 = dma.hbm_to_vmem [thread:$0]  %s31, 1024, %s33, [#allocation9], 64, 64, 4
    $region9: #{tpu_custom_call.1} parent=1 // pred_fallthru
      _
    // Predicated region
    $region10: #{tpu_custom_call.1} parent=1 // pred_check
      _
    $region11: #{tpu_custom_call.1} parent=1 // pred_check_branch
      %40 = sbr.rel (0) target = $region13
    $region12: #{tpu_custom_call.1} parent=1 // pred_region
      %42 = vsyncadd [#allocation9], 0
      %s43 = sshll.u32 %s2, 4
      %s44 = int_to_ptr.hbm [resolvable:$true] %s43
      %s45 = sshll.u32 [#allocation10], 4
      %s46 = int_to_ptr.vmem [resolvable:$true] %s45
      %51 = dma.hbm_to_vmem [thread:$0]  %s44, 1024, %s46, [#allocation9], 64, 64, 4
    $region13: #{tpu_custom_call.1} parent=1 // pred_fallthru
      _
    // Predicated region
    $region14: #{tpu_custom_call.1} parent=1 // pred_check
      _
    $region15: #{tpu_custom_call.1} parent=1 // pred_check_branch
      %53 = sbr.rel (0) target = $region17
    $region16: #{tpu_custom_call.1} parent=1 // pred_region
      _
    $region17: #{tpu_custom_call.1} parent=1 // pred_fallthru
      _
    // Predicated region
    $region18: #{tpu_custom_call.1} parent=1 // pred_check
      _
    $region19: #{tpu_custom_call.1} parent=1 // pred_check_branch
      %55 = sbr.rel (0) target = $region21
    $region20: #{tpu_custom_call.1} parent=1 // pred_region
      _
    $region21: #{tpu_custom_call.1} parent=1 // pred_fallthru
      _
    // Predicated region
    $region22: #{tpu_custom_call.1} parent=1 // pred_check
      _
    $region23: #{tpu_custom_call.1} parent=1 // pred_check_branch
      %57 = sbr.rel (0) target = $region25
    $region24: #{tpu_custom_call.1} parent=1 // pred_region
      %59 = dma.done [#allocation6], 1024
    $region25: #{tpu_custom_call.1} parent=1 // pred_fallthru
      _
    // Predicated region
    $region26: #{tpu_custom_call.1} parent=1 // pred_check
      _
    $region27: #{tpu_custom_call.1} parent=1 // pred_check_branch
      %61 = sbr.rel (0) target = $region29
    $region28: #{tpu_custom_call.1} parent=1 // pred_region
      %63 = dma.done [#allocation9], 1024
    $region29: #{tpu_custom_call.1} parent=1 // pred_fallthru
      _
    // Predicated region
    $region30: #{tpu_custom_call.1} parent=1 // pred_check
      _
    $region31: #{tpu_custom_call.1} parent=1 // pred_check_branch
      %65 = sbr.rel (0) target = $region33
    $region32: #{tpu_custom_call.1} parent=1 // pred_region
      %67 = dma.done [#allocation9], 1024
    $region33: #{tpu_custom_call.1} parent=1 // pred_fallthru
      _
    %v68 = vld [vmem:[#allocation5] sm:$0xf]
    %v69 = vld [vmem:[#allocation5 + $0x4] sm:$0xf]
    %v70 = vld [vmem:[#allocation5 + $0x8] sm:$0xf]
    %v71 = vld [vmem:[#allocation5 + $0xc] sm:$0xf]
    %v72 = vld [vmem:[#allocation5 + $0x10] sm:$0xf]
    %v73 = vld [vmem:[#allocation5 + $0x14] sm:$0xf]
    %v74 = vld [vmem:[#allocation5 + $0x18] sm:$0xf]
    %v75 = vld [vmem:[#allocation5 + $0x1c] sm:$0xf]
    %v76 = vld [vmem:[#allocation5 + $0x20] sm:$0xf]
    %v77 = vld [vmem:[#allocation5 + $0x24] sm:$0xf]
    %v78 = vld [vmem:[#allocation5 + $0x28] sm:$0xf]
    %v79 = vld [vmem:[#allocation5 + $0x2c] sm:$0xf]
    %v80 = vld [vmem:[#allocation5 + $0x30] sm:$0xf]
    %v81 = vld [vmem:[#allocation5 + $0x34] sm:$0xf]
    %v82 = vld [vmem:[#allocation5 + $0x38] sm:$0xf]
    %v83 = vld [vmem:[#allocation5 + $0x3c] sm:$0xf]
    %v84 = vld [vmem:[#allocation8] sm:$0xf]
    %v85 = vld [vmem:[#allocation8 + $0x4] sm:$0xf]
    %v86 = vld [vmem:[#allocation8 + $0x8] sm:$0xf]
    %v87 = vld [vmem:[#allocation8 + $0xc] sm:$0xf]
    %v88 = vld [vmem:[#allocation8 + $0x10] sm:$0xf]
    %v89 = vld [vmem:[#allocation8 + $0x14] sm:$0xf]
    %v90 = vld [vmem:[#allocation8 + $0x18] sm:$0xf]
    %v91 = vld [vmem:[#allocation8 + $0x1c] sm:$0xf]
    %v92 = vld [vmem:[#allocation8 + $0x20] sm:$0xf]
    %v93 = vld [vmem:[#allocation8 + $0x24] sm:$0xf]
    %v94 = vld [vmem:[#allocation8 + $0x28] sm:$0xf]
    %v95 = vld [vmem:[#allocation8 + $0x2c] sm:$0xf]
    %v96 = vld [vmem:[#allocation8 + $0x30] sm:$0xf]
    %v97 = vld [vmem:[#allocation8 + $0x34] sm:$0xf]
    %v98 = vld [vmem:[#allocation8 + $0x38] sm:$0xf]
    %v99 = vld [vmem:[#allocation8 + $0x3c] sm:$0xf]
    %v100 = vld [vmem:[%s3] sm:$0x1]
    %v102 = vperm.slane %v100, 0
    %v120 = vunpack.c.l.b16 %v68
    %v121 = vunpack.c.l.b16 %v69
    %v122 = vunpack.c.l.b16 %v70
    %v123 = vunpack.c.l.b16 %v71
    %v124 = vunpack.c.l.b16 %v72
    %v125 = vunpack.c.l.b16 %v73
    %v126 = vunpack.c.l.b16 %v74
    %v127 = vunpack.c.l.b16 %v75
    %v128 = vunpack.c.l.b16 %v76
    %v129 = vunpack.c.l.b16 %v77
    %v130 = vunpack.c.l.b16 %v78
    %v131 = vunpack.c.l.b16 %v79
    %v132 = vunpack.c.l.b16 %v80
    %v133 = vunpack.c.l.b16 %v81
    %v134 = vunpack.c.l.b16 %v82
    %v135 = vunpack.c.l.b16 %v83
    %v136 = vpack.c.b16 %v121, %v120
    %v137 = vpack.c.b16 %v123, %v122
    %v138 = vpack.c.b16 %v125, %v124
    %v139 = vpack.c.b16 %v127, %v126
    %v140 = vpack.c.b16 %v129, %v128
    %v141 = vpack.c.b16 %v131, %v130
    %v142 = vpack.c.b16 %v133, %v132
    %v143 = vpack.c.b16 %v135, %v134
    %v168 = vunpack.c.l.b16 %v84
    %v169 = vunpack.c.l.b16 %v85
    %v170 = vunpack.c.l.b16 %v86
    %v171 = vunpack.c.l.b16 %v87
    %v172 = vunpack.c.l.b16 %v88
    %v173 = vunpack.c.l.b16 %v89
    %v174 = vunpack.c.l.b16 %v90
    %v175 = vunpack.c.l.b16 %v91
    %v176 = vunpack.c.l.b16 %v92
    %v177 = vunpack.c.l.b16 %v93
    %v178 = vunpack.c.l.b16 %v94
    %v179 = vunpack.c.l.b16 %v95
    %v180 = vunpack.c.l.b16 %v96
    %v181 = vunpack.c.l.b16 %v97
    %v182 = vunpack.c.l.b16 %v98
    %v183 = vunpack.c.l.b16 %v99
    %v184 = vpack.c.b16 %v169, %v168
    %v185 = vpack.c.b16 %v171, %v170
    %v186 = vpack.c.b16 %v173, %v172
    %v187 = vpack.c.b16 %v175, %v174
    %v188 = vpack.c.b16 %v177, %v176
    %v189 = vpack.c.b16 %v179, %v178
    %v190 = vpack.c.b16 %v181, %v180
    %v191 = vpack.c.b16 %v183, %v182
    %200 = vmatpush.bf16.msra.mxu0 %v191
    %201 = vmatpush.bf16.msra.mxu0 %v190
    %202 = vmatpush.bf16.msra.mxu0 %v189
    %203 = vmatpush.bf16.msra.mxu0 %v188
    %204 = vmatpush.bf16.msra.mxu0 %v187
    %205 = vmatpush.bf16.msra.mxu0 %v186
    %206 = vmatpush.bf16.msra.mxu0 %v185
    %207 = vmatpush.bf16.msra.mxu0 %v184
    %208 = vmatmul.bf16.gmra.mxu0 %v136
    %v209 = vpop.f32.mrf.mxu0
    %v210 = vadd.f32 %v102, %v209
    %v211 = vpop.f32.mrf.mxu0
    %v212 = vadd.f32 %v102, %v211
    %213 = vmatmul.bf16.gmra.mxu0 %v137
    %v214 = vpop.f32.mrf.mxu0
    %v215 = vadd.f32 %v102, %v214
    %v216 = vpop.f32.mrf.mxu0
    %v217 = vadd.f32 %v102, %v216
    %218 = vmatmul.bf16.gmra.mxu0 %v138
    %v219 = vpop.f32.mrf.mxu0
    %v220 = vadd.f32 %v102, %v219
    %v221 = vpop.f32.mrf.mxu0
    %v222 = vadd.f32 %v102, %v221
    %223 = vmatmul.bf16.gmra.mxu0 %v139
    %v224 = vpop.f32.mrf.mxu0
    %v225 = vadd.f32 %v102, %v224
    %v226 = vpop.f32.mrf.mxu0
    %v227 = vadd.f32 %v102, %v226
    %228 = vmatmul.bf16.gmra.mxu0 %v140
    %v229 = vpop.f32.mrf.mxu0
    %v230 = vadd.f32 %v102, %v229
    %v231 = vpop.f32.mrf.mxu0
    %v232 = vadd.f32 %v102, %v231
    %233 = vmatmul.bf16.gmra.mxu0 %v141
    %v234 = vpop.f32.mrf.mxu0
    %v235 = vadd.f32 %v102, %v234
    %v236 = vpop.f32.mrf.mxu0
    %v237 = vadd.f32 %v102, %v236
    %238 = vmatmul.bf16.gmra.mxu0 %v142
    %v239 = vpop.f32.mrf.mxu0
    %v240 = vadd.f32 %v102, %v239
    %v241 = vpop.f32.mrf.mxu0
    %v242 = vadd.f32 %v102, %v241
    %243 = vmatmul.bf16.gmra.mxu0 %v143
    %v244 = vpop.f32.mrf.mxu0
    %v245 = vadd.f32 %v102, %v244
    %v246 = vpop.f32.mrf.mxu0
    %v247 = vadd.f32 %v102, %v246
    %248 = vdwg.mxu0
    %249 = vst [vmem:[#allocation2] sm:$0xff] %v210
    %250 = vst [vmem:[#allocation2 + $0x8] sm:$0xff] %v212
    %251 = vst [vmem:[#allocation2 + $0x10] sm:$0xff] %v215
    %252 = vst [vmem:[#allocation2 + $0x18] sm:$0xff] %v217
    %253 = vst [vmem:[#allocation2 + $0x20] sm:$0xff] %v220
    %254 = vst [vmem:[#allocation2 + $0x28] sm:$0xff] %v222
    %255 = vst [vmem:[#allocation2 + $0x30] sm:$0xff] %v225
    %256 = vst [vmem:[#allocation2 + $0x38] sm:$0xff] %v227
    %257 = vst [vmem:[#allocation2 + $0x40] sm:$0xff] %v230
    %258 = vst [vmem:[#allocation2 + $0x48] sm:$0xff] %v232
    %259 = vst [vmem:[#allocation2 + $0x50] sm:$0xff] %v235
    %260 = vst [vmem:[#allocation2 + $0x58] sm:$0xff] %v237
    %261 = vst [vmem:[#allocation2 + $0x60] sm:$0xff] %v240
    %262 = vst [vmem:[#allocation2 + $0x68] sm:$0xff] %v242
    %263 = vst [vmem:[#allocation2 + $0x70] sm:$0xff] %v245
    %264 = vst [vmem:[#allocation2 + $0x78] sm:$0xff] %v247
    %p265 = scmp.eq.s32.totalorder 0, 0
    // Predicated region
    $region34: #{tpu_custom_call.1} parent=1 // pred_check
      %p266 = pneg %p265
    $region35: #{tpu_custom_call.1} parent=1 // pred_check_branch
      %268 = sbr.rel (%p266) target = $region37
    $region36: #{tpu_custom_call.1} parent=1 // pred_region
      %269 = vst [vmem:[#allocation3] sm:$0xff] 0.0
      %270 = vst [vmem:[#allocation3 + $0x8] sm:$0xff] 0.0
      %271 = vst [vmem:[#allocation4] sm:$0xff] 0.0
      %272 = vst [vmem:[#allocation4 + $0x8] sm:$0xff] 0.0
    $region37: #{tpu_custom_call.1} parent=1 // pred_fallthru
      _
    %v273 = vld [vmem:[#allocation10] sm:$0xf]
    %v274 = vld [vmem:[#allocation10 + $0x4] sm:$0xf]
    %v275 = vld [vmem:[#allocation10 + $0x8] sm:$0xf]
    %v276 = vld [vmem:[#allocation10 + $0xc] sm:$0xf]
    %v277 = vld [vmem:[#allocation10 + $0x10] sm:$0xf]
    %v278 = vld [vmem:[#allocation10 + $0x14] sm:$0xf]
    %v279 = vld [vmem:[#allocation10 + $0x18] sm:$0xf]
    %v280 = vld [vmem:[#allocation10 + $0x1c] sm:$0xf]
    %v281 = vld [vmem:[#allocation10 + $0x20] sm:$0xf]
    %v282 = vld [vmem:[#allocation10 + $0x24] sm:$0xf]
    %v283 = vld [vmem:[#allocation10 + $0x28] sm:$0xf]
    %v284 = vld [vmem:[#allocation10 + $0x2c] sm:$0xf]
    %v285 = vld [vmem:[#allocation10 + $0x30] sm:$0xf]
    %v286 = vld [vmem:[#allocation10 + $0x34] sm:$0xf]
    %v287 = vld [vmem:[#allocation10 + $0x38] sm:$0xf]
    %v288 = vld [vmem:[#allocation10 + $0x3c] sm:$0xf]
    %v289 = vld [vmem:[%s4] sm:$0x1]
    %p290 = scmp.gt.s32.totalorder 0, 0
    %s291 = scalar_select %p290, 1, 0
    %s292 = scvt.s32.f32 %s291
    %v293 = vstv %s292
    %v294 = vmul.f32 %v293, %v289
    %v295 = vld [vmem:[#allocation3] sm:$0xff]
    %v296 = vld [vmem:[#allocation3 + $0x8] sm:$0xff]
    %v297 = vld [vmem:[#allocation2] sm:$0xff]
    %v298 = vld [vmem:[#allocation2 + $0x8] sm:$0xff]
    %v299 = vpack.c.bf16 %v296, %v295
    %v316 = vunpack.c.l.b16 %v273
    %v317 = vunpack.c.l.b16 %v274
    %v318 = vunpack.c.l.b16 %v275
    %v319 = vunpack.c.l.b16 %v276
    %v320 = vunpack.c.l.b16 %v277
    %v321 = vunpack.c.l.b16 %v278
    %v322 = vunpack.c.l.b16 %v279
    %v323 = vunpack.c.l.b16 %v280
    %v324 = vunpack.c.l.b16 %v281
    %v325 = vunpack.c.l.b16 %v282
    %v326 = vunpack.c.l.b16 %v283
    %v327 = vunpack.c.l.b16 %v284
    %v328 = vunpack.c.l.b16 %v285
    %v329 = vunpack.c.l.b16 %v286
    %v330 = vunpack.c.l.b16 %v287
    %v331 = vunpack.c.l.b16 %v288
    %v332 = vpack.c.b16 %v317, %v316
    %v333 = vpack.c.b16 %v319, %v318
    %v334 = vpack.c.b16 %v321, %v320
    %v335 = vpack.c.b16 %v323, %v322
    %v336 = vpack.c.b16 %v325, %v324
    %v337 = vpack.c.b16 %v327, %v326
    %v338 = vpack.c.b16 %v329, %v328
    %v339 = vpack.c.b16 %v331, %v330
    %348 = vmatpush.bf16.msra.mxu0 %v339
    %349 = vmatpush.bf16.msra.mxu0 %v338
    %350 = vmatpush.bf16.msra.mxu0 %v337
    %351 = vmatpush.bf16.msra.mxu0 %v336
    %352 = vmatpush.bf16.msra.mxu0 %v335
    %353 = vmatpush.bf16.msra.mxu0 %v334
    %354 = vmatpush.bf16.msra.mxu0 %v333
    %355 = vmatpush.bf16.msra.mxu0 %v332
    %356 = vmatmul.bf16.gmra.mxu0 %v299
    %v357 = vpop.f32.mrf.mxu0
    %v358 = vadd.f32 0.0, %v357
    %v359 = vpop.f32.mrf.mxu0
    %v360 = vadd.f32 0.0, %v359
    %361 = vdwg.mxu0
    %v362 = vadd.f32 %v297, %v358
    %v363 = vadd.f32 %v298, %v360
    %v365 = vperm.slane %v294, 0
    %v367 = vadd.f32 %v362, %v365
    %v368 = vadd.f32 %v363, %v365
    %v369 = vmax.f32 %v367, 0.0
    %v370 = vmax.f32 %v368, 0.0
    %v371 = vld [vmem:[#allocation4] sm:$0xff]
    %v372 = vld [vmem:[#allocation4 + $0x8] sm:$0xff]
    %v373 = vadd.f32 %v371, %v369
    %v374 = vadd.f32 %v372, %v370
    %375 = vst [vmem:[#allocation4] sm:$0xff] %v373
    %376 = vst [vmem:[#allocation4 + $0x8] sm:$0xff] %v374
    %s377 = scalar_lea.vmem [#allocation2], 16
    %v378 = vld [vmem:[%s377] sm:$0xff]
    %v379 = vld [vmem:[%s377 + $0x8] sm:$0xff]
    %v380 = vpack.c.bf16 %v370, %v369
    %381 = vmatpush.bf16.msra.mxu0 %v339
    %382 = vmatpush.bf16.msra.mxu0 %v338
    %383 = vmatpush.bf16.msra.mxu0 %v337
    %384 = vmatpush.bf16.msra.mxu0 %v336
    %385 = vmatpush.bf16.msra.mxu0 %v335
    %386 = vmatpush.bf16.msra.mxu0 %v334
    %387 = vmatpush.bf16.msra.mxu0 %v333
    %388 = vmatpush.bf16.msra.mxu0 %v332
    %389 = vmatmul.bf16.gmra.mxu0 %v380
    %v390 = vpop.f32.mrf.mxu0
    %v391 = vadd.f32 0.0, %v390
    %v392 = vpop.f32.mrf.mxu0
    %v393 = vadd.f32 0.0, %v392
    %394 = vdwg.mxu0
    %v395 = vadd.f32 %v378, %v391
    %v396 = vadd.f32 %v379, %v393
    %v398 = vperm.slane %v289, 0
    %v400 = vadd.f32 %v395, %v398
    %v401 = vadd.f32 %v396, %v398
    %v402 = vmax.f32 %v400, 0.0
    %v403 = vmax.f32 %v401, 0.0
    %v404 = vld [vmem:[#allocation4] sm:$0xff]
    %v405 = vld [vmem:[#allocation4 + $0x8] sm:$0xff]
    %v406 = vadd.f32 %v404, %v402
    %v407 = vadd.f32 %v405, %v403
    %408 = vst [vmem:[#allocation4] sm:$0xff] %v406
    %409 = vst [vmem:[#allocation4 + $0x8] sm:$0xff] %v407
    %s410 = scalar_lea.vmem [#allocation2], 32
    %v411 = vld [vmem:[%s410] sm:$0xff]
    %v412 = vld [vmem:[%s410 + $0x8] sm:$0xff]
    %v413 = vpack.c.bf16 %v403, %v402
    %414 = vmatpush.bf16.msra.mxu0 %v339
    %415 = vmatpush.bf16.msra.mxu0 %v338
    %416 = vmatpush.bf16.msra.mxu0 %v337
    %417 = vmatpush.bf16.msra.mxu0 %v336
    %418 = vmatpush.bf16.msra.mxu0 %v335
    %419 = vmatpush.bf16.msra.mxu0 %v334
    %420 = vmatpush.bf16.msra.mxu0 %v333
    %421 = vmatpush.bf16.msra.mxu0 %v332
    %422 = vmatmul.bf16.gmra.mxu0 %v413
    %v423 = vpop.f32.mrf.mxu0
    %v424 = vadd.f32 0.0, %v423
    %v425 = vpop.f32.mrf.mxu0
    %v426 = vadd.f32 0.0, %v425
    %427 = vdwg.mxu0
    %v428 = vadd.f32 %v411, %v424
    %v429 = vadd.f32 %v412, %v426
    %v430 = vadd.f32 %v428, %v398
    %v431 = vadd.f32 %v429, %v398
    %v432 = vmax.f32 %v430, 0.0
    %v433 = vmax.f32 %v431, 0.0
    %v434 = vld [vmem:[#allocation4] sm:$0xff]
    %v435 = vld [vmem:[#allocation4 + $0x8] sm:$0xff]
    %v436 = vadd.f32 %v434, %v432
    %v437 = vadd.f32 %v435, %v433
    %438 = vst [vmem:[#allocation4] sm:$0xff] %v436
    %439 = vst [vmem:[#allocation4 + $0x8] sm:$0xff] %v437
    %s440 = scalar_lea.vmem [#allocation2], 48
    %v441 = vld [vmem:[%s440] sm:$0xff]
    %v442 = vld [vmem:[%s440 + $0x8] sm:$0xff]
    %v443 = vpack.c.bf16 %v433, %v432
    %444 = vmatpush.bf16.msra.mxu0 %v339
    %445 = vmatpush.bf16.msra.mxu0 %v338
    %446 = vmatpush.bf16.msra.mxu0 %v337
    %447 = vmatpush.bf16.msra.mxu0 %v336
    %448 = vmatpush.bf16.msra.mxu0 %v335
    %449 = vmatpush.bf16.msra.mxu0 %v334
    %450 = vmatpush.bf16.msra.mxu0 %v333
    %451 = vmatpush.bf16.msra.mxu0 %v332
    %452 = vmatmul.bf16.gmra.mxu0 %v443
    %v453 = vpop.f32.mrf.mxu0
    %v454 = vadd.f32 0.0, %v453
    %v455 = vpop.f32.mrf.mxu0
    %v456 = vadd.f32 0.0, %v455
    %457 = vdwg.mxu0
    %v458 = vadd.f32 %v441, %v454
    %v459 = vadd.f32 %v442, %v456
    %v460 = vadd.f32 %v458, %v398
    %v461 = vadd.f32 %v459, %v398
    %v462 = vmax.f32 %v460, 0.0
    %v463 = vmax.f32 %v461, 0.0
    %v464 = vld [vmem:[#allocation4] sm:$0xff]
    %v465 = vld [vmem:[#allocation4 + $0x8] sm:$0xff]
    %v466 = vadd.f32 %v464, %v462
    %v467 = vadd.f32 %v465, %v463
    %468 = vst [vmem:[#allocation4] sm:$0xff] %v466
    %469 = vst [vmem:[#allocation4 + $0x8] sm:$0xff] %v467
    %s470 = scalar_lea.vmem [#allocation2], 64
    %v471 = vld [vmem:[%s470] sm:$0xff]
    %v472 = vld [vmem:[%s470 + $0x8] sm:$0xff]
    %v473 = vpack.c.bf16 %v463, %v462
    %474 = vmatpush.bf16.msra.mxu0 %v339
    %475 = vmatpush.bf16.msra.mxu0 %v338
    %476 = vmatpush.bf16.msra.mxu0 %v337
    %477 = vmatpush.bf16.msra.mxu0 %v336
    %478 = vmatpush.bf16.msra.mxu0 %v335
    %479 = vmatpush.bf16.msra.mxu0 %v334
    %480 = vmatpush.bf16.msra.mxu0 %v333
    %481 = vmatpush.bf16.msra.mxu0 %v332
    %482 = vmatmul.bf16.gmra.mxu0 %v473
    %v483 = vpop.f32.mrf.mxu0
    %v484 = vadd.f32 0.0, %v483
    %v485 = vpop.f32.mrf.mxu0
    %v486 = vadd.f32 0.0, %v485
    %487 = vdwg.mxu0
    %v488 = vadd.f32 %v471, %v484
    %v489 = vadd.f32 %v472, %v486
    %v490 = vadd.f32 %v488, %v398
    %v491 = vadd.f32 %v489, %v398
    %v492 = vmax.f32 %v490, 0.0
    %v493 = vmax.f32 %v491, 0.0
    %v494 = vld [vmem:[#allocation4] sm:$0xff]
    %v495 = vld [vmem:[#allocation4 + $0x8] sm:$0xff]
    %v496 = vadd.f32 %v494, %v492
    %v497 = vadd.f32 %v495, %v493
    %498 = vst [vmem:[#allocation4] sm:$0xff] %v496
    %499 = vst [vmem:[#allocation4 + $0x8] sm:$0xff] %v497
    %s500 = scalar_lea.vmem [#allocation2], 80
    %v501 = vld [vmem:[%s500] sm:$0xff]
    %v502 = vld [vmem:[%s500 + $0x8] sm:$0xff]
    %v503 = vpack.c.bf16 %v493, %v492
    %504 = vmatpush.bf16.msra.mxu0 %v339
    %505 = vmatpush.bf16.msra.mxu0 %v338
    %506 = vmatpush.bf16.msra.mxu0 %v337
    %507 = vmatpush.bf16.msra.mxu0 %v336
    %508 = vmatpush.bf16.msra.mxu0 %v335
    %509 = vmatpush.bf16.msra.mxu0 %v334
    %510 = vmatpush.bf16.msra.mxu0 %v333
    %511 = vmatpush.bf16.msra.mxu0 %v332
    %512 = vmatmul.bf16.gmra.mxu0 %v503
    %v513 = vpop.f32.mrf.mxu0
    %v514 = vadd.f32 0.0, %v513
    %v515 = vpop.f32.mrf.mxu0
    %v516 = vadd.f32 0.0, %v515
    %517 = vdwg.mxu0
    %v518 = vadd.f32 %v501, %v514
    %v519 = vadd.f32 %v502, %v516
    %v520 = vadd.f32 %v518, %v398
    %v521 = vadd.f32 %v519, %v398
    %v522 = vmax.f32 %v520, 0.0
    %v523 = vmax.f32 %v521, 0.0
    %v524 = vld [vmem:[#allocation4] sm:$0xff]
    %v525 = vld [vmem:[#allocation4 + $0x8] sm:$0xff]
    %v526 = vadd.f32 %v524, %v522
    %v527 = vadd.f32 %v525, %v523
    %528 = vst [vmem:[#allocation4] sm:$0xff] %v526
    %529 = vst [vmem:[#allocation4 + $0x8] sm:$0xff] %v527
    %s530 = scalar_lea.vmem [#allocation2], 96
    %v531 = vld [vmem:[%s530] sm:$0xff]
    %v532 = vld [vmem:[%s530 + $0x8] sm:$0xff]
    %v533 = vpack.c.bf16 %v523, %v522
    %534 = vmatpush.bf16.msra.mxu0 %v339
    %535 = vmatpush.bf16.msra.mxu0 %v338
    %536 = vmatpush.bf16.msra.mxu0 %v337
    %537 = vmatpush.bf16.msra.mxu0 %v336
    %538 = vmatpush.bf16.msra.mxu0 %v335
    %539 = vmatpush.bf16.msra.mxu0 %v334
    %540 = vmatpush.bf16.msra.mxu0 %v333
    %541 = vmatpush.bf16.msra.mxu0 %v332
    %542 = vmatmul.bf16.gmra.mxu0 %v533
    %v543 = vpop.f32.mrf.mxu0
    %v544 = vadd.f32 0.0, %v543
    %v545 = vpop.f32.mrf.mxu0
    %v546 = vadd.f32 0.0, %v545
    %547 = vdwg.mxu0
    %v548 = vadd.f32 %v531, %v544
    %v549 = vadd.f32 %v532, %v546
    %v550 = vadd.f32 %v548, %v398
    %v551 = vadd.f32 %v549, %v398
    %v552 = vmax.f32 %v550, 0.0
    %v553 = vmax.f32 %v551, 0.0
    %v554 = vld [vmem:[#allocation4] sm:$0xff]
    %v555 = vld [vmem:[#allocation4 + $0x8] sm:$0xff]
    %v556 = vadd.f32 %v554, %v552
    %v557 = vadd.f32 %v555, %v553
    %558 = vst [vmem:[#allocation4] sm:$0xff] %v556
    %559 = vst [vmem:[#allocation4 + $0x8] sm:$0xff] %v557
    %s560 = scalar_lea.vmem [#allocation2], 112
    %v561 = vld [vmem:[%s560] sm:$0xff]
    %v562 = vld [vmem:[%s560 + $0x8] sm:$0xff]
    %v563 = vpack.c.bf16 %v553, %v552
    %564 = vmatpush.bf16.msra.mxu0 %v339
    %565 = vmatpush.bf16.msra.mxu0 %v338
    %566 = vmatpush.bf16.msra.mxu0 %v337
    %567 = vmatpush.bf16.msra.mxu0 %v336
    %568 = vmatpush.bf16.msra.mxu0 %v335
    %569 = vmatpush.bf16.msra.mxu0 %v334
    %570 = vmatpush.bf16.msra.mxu0 %v333
    %571 = vmatpush.bf16.msra.mxu0 %v332
    %572 = vmatmul.bf16.gmra.mxu0 %v563
    %v573 = vpop.f32.mrf.mxu0
    %v574 = vadd.f32 0.0, %v573
    %v575 = vpop.f32.mrf.mxu0
    %v576 = vadd.f32 0.0, %v575
    %577 = vdwg.mxu0
    %v578 = vadd.f32 %v561, %v574
    %v579 = vadd.f32 %v562, %v576
    %v580 = vadd.f32 %v578, %v398
    %v581 = vadd.f32 %v579, %v398
    %v582 = vmax.f32 %v580, 0.0
    %v583 = vmax.f32 %v581, 0.0
    %v584 = vld [vmem:[#allocation4] sm:$0xff]
    %v585 = vld [vmem:[#allocation4 + $0x8] sm:$0xff]
    %v586 = vadd.f32 %v584, %v582
    %v587 = vadd.f32 %v585, %v583
    %588 = vst [vmem:[#allocation4] sm:$0xff] %v586
    %589 = vst [vmem:[#allocation4 + $0x8] sm:$0xff] %v587
    %590 = vst [vmem:[#allocation3] sm:$0xff] %v582
    %591 = vst [vmem:[#allocation3 + $0x8] sm:$0xff] %v583
    // Predicated region
    $region38: #{tpu_custom_call.1} parent=1 // pred_check
      %p592 = pneg %p265
    $region39: #{tpu_custom_call.1} parent=1 // pred_check_branch
      %594 = sbr.rel (%p592) target = $region41
    $region40: #{tpu_custom_call.1} parent=1 // pred_region
      %v595 = vld [vmem:[#allocation4] sm:$0xff]
      %v596 = vld [vmem:[#allocation4 + $0x8] sm:$0xff]
      %v597 = vmul.f32 %v595, 0.125
      %v598 = vmul.f32 %v596, 0.125
      %599 = vst [vmem:[#allocation11] sm:$0xff] %v597
      %600 = vst [vmem:[#allocation11 + $0x8] sm:$0xff] %v598
    $region41: #{tpu_custom_call.1} parent=1 // pred_fallthru
      _
    // Predicated region
    $region42: #{tpu_custom_call.1} parent=1 // pred_check
      _
    $region43: #{tpu_custom_call.1} parent=1 // pred_check_branch
      %602 = sbr.rel (0) target = $region45
    $region44: #{tpu_custom_call.1} parent=1 // pred_region
      %604 = vsyncadd [#allocation7], 0
      %s605 = sshll.u32 [#allocation11], 4
      %s606 = int_to_ptr.vmem [resolvable:$true] %s605
      %s607 = sshll.u32 %s5, 4
      %s608 = int_to_ptr.hbm [resolvable:$true] %s607
      %613 = dma.vmem_to_hbm [thread:$0]  %s606, 256, %s608, [#allocation7], 128, 128, 8
    $region45: #{tpu_custom_call.1} parent=1 // pred_fallthru
      _
    // Predicated region
    $region46: #{tpu_custom_call.1} parent=1 // pred_check
      _
    $region47: #{tpu_custom_call.1} parent=1 // pred_check_branch
      %615 = sbr.rel (0) target = $region49
    $region48: #{tpu_custom_call.1} parent=1 // pred_region
      %617 = dma.done [#allocation7], 256
    $region49: #{tpu_custom_call.1} parent=1 // pred_fallthru
      _
    %618 = vsyncpa [#allocation6], 1
    %619 = vsyncpa [#allocation9], 1
    %620 = vsyncpa [#allocation7], 1

</llo_original>
